<compile_context>
chip_gen: v5e
topology: v5e:2x2
jax: 0.10.0
libtpu: 0.0.40
codegen_flags: <defaults>
</compile_context>

<pallas_src>
import jax
import jax.numpy as jnp
from jax.experimental import pallas as pl
from jax.experimental.pallas import tpu as pltpu  # noqa: F401 (kept for TPU backend import)


def mlp_kernel(x_ref, w1_ref, b1_ref, w2_ref, b2_ref, o_ref):
    def sigmoid(z):
        # exp on the EUP, exact divide (no approx reciprocal -> full accuracy).
        return 1.0 / (1.0 + jnp.exp(-z))

    # hidden = sigmoid(x @ W1 + b1)   -- MXU matmul, f32 accumulation
    h = jnp.dot(x_ref[...], w1_ref[...], preferred_element_type=jnp.float32)
    h = sigmoid(h + b1_ref[...])
    # out = sigmoid(h @ W2 + b2)
    o = jnp.dot(h, w2_ref[...], preferred_element_type=jnp.float32)
    o_ref[...] = sigmoid(o + b2_ref[...]).astype(o_ref.dtype)


def net_forward(x, w1, b1, w2, b2):
    """Forward pass of the 2-layer sigmoid MLP.

    x : (N, D_in)   f32
    w1: (D_in, H)   f32  (pre-transposed vs. torch.nn.Linear weight)
    b1: (1, H)      f32
    w2: (H, D_out)  f32
    b2: (1, D_out)  f32
    """
    n, d_in = x.shape
    h_dim = w1.shape[1]
    d_out = w2.shape[1]

    # Single-block launch: every operand's block equals the full array, so
    # the (8,128) constraint is satisfied without any padding, and the whole
    # problem (< 1 MiB) is resident in VMEM for one grid step.
    return pl.pallas_call(
        mlp_kernel,
        out_shape=jax.ShapeDtypeStruct((n, d_out), jnp.float32),
        grid=(1,),
        in_specs=[
            pl.BlockSpec((n, d_in), lambda i: (0, 0)),       # x
            pl.BlockSpec((d_in, h_dim), lambda i: (0, 0)),   # W1
            pl.BlockSpec((1, h_dim), lambda i: (0, 0)),      # b1
            pl.BlockSpec((h_dim, d_out), lambda i: (0, 0)),  # W2
            pl.BlockSpec((1, d_out), lambda i: (0, 0)),      # b2
        ],
        out_specs=pl.BlockSpec((n, d_out), lambda i: (0, 0)),
    )(x, w1, b1, w2, b2)


def init_params(key, n_input, n_hidden, n_output):
    """Deterministic init mimicking torch.nn.Linear default (uniform +-1/sqrt(fan_in))."""
    k1, k2, k3, k4 = jax.random.split(key, 4)
    bound1 = 1.0 / (n_input ** 0.5)
    bound2 = 1.0 / (n_hidden ** 0.5)
    w1 = jax.random.uniform(k1, (n_input, n_hidden), jnp.float32, -bound1, bound1)
    b1 = jax.random.uniform(k2, (1, n_hidden), jnp.float32, -bound1, bound1)
    w2 = jax.random.uniform(k3, (n_hidden, n_output), jnp.float32, -bound2, bound2)
    b2 = jax.random.uniform(k4, (1, n_output), jnp.float32, -bound2, bound2)
    return w1, b1, w2, b2


if __name__ == "__main__":
    # Shapes from the torch spec: x = Tensor(500, 5); hidden=32, output=3.
    N, D_in, H, D_out = 500, 5, 32, 3

    key = jax.random.PRNGKey(0)
    kx, kp = jax.random.split(key)
    x = jax.random.uniform(kx, (N, D_in), jnp.float32, -5.0, 5.0)
    w1, b1, w2, b2 = init_params(kp, D_in, H, D_out)

    out = net_forward(x, w1, b1, w2, b2)
    out = jax.block_until_ready(out)

    # Pure-JAX reference check (exact sigmoid now -> float32 round-off only).
    ref = jax.nn.sigmoid(jax.nn.sigmoid(x @ w1 + b1) @ w2 + b2)
    assert out.shape == (N, D_out)
    assert jnp.allclose(out, ref, atol=1e-4, rtol=1e-4), float(
        jnp.max(jnp.abs(out - ref)))

    print("KERNEL_OK")
</pallas_src>

<mosaic_0001>
module attributes {stable_mosaic.version = 11 : i64} {
  func.func @mlp_kernel(%arg0: i32, %arg1: memref<500x5xf32, #tpu.memory_space<vmem>>, %arg2: memref<5x32xf32, #tpu.memory_space<vmem>>, %arg3: memref<1x32xf32, #tpu.memory_space<vmem>>, %arg4: memref<32x3xf32, #tpu.memory_space<vmem>>, %arg5: memref<1x3xf32, #tpu.memory_space<vmem>>, %arg6: memref<500x3xf32, #tpu.memory_space<vmem>>) attributes {dimension_semantics = [#tpu.dimension_semantics<arbitrary>], iteration_bounds = array<i64: 1>, scalar_prefetch = 0 : i64, scratch_operands = 0 : i64, tpu.core_type = #tpu.core_type<tc>, window_params = [{pipeline_mode = #tpu.pipeline_mode<synchronous>, transform_indices = @transform_0, window_bounds = array<i64: 500, 5>}, {pipeline_mode = #tpu.pipeline_mode<synchronous>, transform_indices = @transform_1, window_bounds = array<i64: 5, 32>}, {pipeline_mode = #tpu.pipeline_mode<synchronous>, transform_indices = @transform_2, window_bounds = array<i64: 1, 32>}, {pipeline_mode = #tpu.pipeline_mode<synchronous>, transform_indices = @transform_3, window_bounds = array<i64: 32, 3>}, {pipeline_mode = #tpu.pipeline_mode<synchronous>, transform_indices = @transform_4, window_bounds = array<i64: 1, 3>}, {pipeline_mode = #tpu.pipeline_mode<synchronous>, transform_indices = @transform_5, window_bounds = array<i64: 500, 3>}]} {
    %c0 = arith.constant 0 : index
    %c0_0 = arith.constant 0 : index
    %0 = vector.load %arg1[%c0, %c0_0] : memref<500x5xf32, #tpu.memory_space<vmem>>, vector<500x5xf32>
    %c0_1 = arith.constant 0 : index
    %c0_2 = arith.constant 0 : index
    %1 = vector.load %arg2[%c0_1, %c0_2] : memref<5x32xf32, #tpu.memory_space<vmem>>, vector<5x32xf32>
    %cst = arith.constant dense<0.000000e+00> : vector<500x32xf32>
    %2 = tpu.matmul %0, %1, %cst {dimension_numbers = #tpu.dot_dimension_numbers<[1], [0], [0], [1], [0, 0, 1, 1], [], []>} : vector<500x5xf32>, vector<5x32xf32>, vector<500x32xf32> -> vector<500x32xf32>
    %c0_3 = arith.constant 0 : index
    %c0_4 = arith.constant 0 : index
    %3 = vector.load %arg3[%c0_3, %c0_4] : memref<1x32xf32, #tpu.memory_space<vmem>>, vector<1x32xf32>
    %4 = vector.broadcast %3 : vector<1x32xf32> to vector<500x32xf32>
    %5 = arith.addf %2, %4 : vector<500x32xf32>
    %cst_5 = arith.constant 0.000000e+00 : f32
    %6 = vector.broadcast %cst_5 : f32 to vector<500x32xf32>
    %7 = arith.subf %6, %5 : vector<500x32xf32>
    %8 = math.exp %7 : vector<500x32xf32>
    %cst_6 = arith.constant 1.000000e+00 : f32
    %9 = vector.broadcast %cst_6 : f32 to vector<500x32xf32>
    %10 = arith.addf %9, %8 : vector<500x32xf32>
    %cst_7 = arith.constant 1.000000e+00 : f32
    %11 = vector.broadcast %cst_7 : f32 to vector<500x32xf32>
    %12 = arith.divf %11, %10 : vector<500x32xf32>
    %c0_8 = arith.constant 0 : index
    %c0_9 = arith.constant 0 : index
    %13 = vector.load %arg4[%c0_8, %c0_9] : memref<32x3xf32, #tpu.memory_space<vmem>>, vector<32x3xf32>
    %cst_10 = arith.constant dense<0.000000e+00> : vector<500x3xf32>
    %14 = tpu.matmul %12, %13, %cst_10 {dimension_numbers = #tpu.dot_dimension_numbers<[1], [0], [0], [1], [0, 0, 1, 1], [], []>} : vector<500x32xf32>, vector<32x3xf32>, vector<500x3xf32> -> vector<500x3xf32>
    %c0_11 = arith.constant 0 : index
    %c0_12 = arith.constant 0 : index
    %15 = vector.load %arg5[%c0_11, %c0_12] : memref<1x3xf32, #tpu.memory_space<vmem>>, vector<1x3xf32>
    %16 = vector.broadcast %15 : vector<1x3xf32> to vector<500x3xf32>
    %17 = arith.addf %14, %16 : vector<500x3xf32>
    %cst_13 = arith.constant 0.000000e+00 : f32
    %18 = vector.broadcast %cst_13 : f32 to vector<500x3xf32>
    %19 = arith.subf %18, %17 : vector<500x3xf32>
    %20 = math.exp %19 : vector<500x3xf32>
    %cst_14 = arith.constant 1.000000e+00 : f32
    %21 = vector.broadcast %cst_14 : f32 to vector<500x3xf32>
    %22 = arith.addf %21, %20 : vector<500x3xf32>
    %cst_15 = arith.constant 1.000000e+00 : f32
    %23 = vector.broadcast %cst_15 : f32 to vector<500x3xf32>
    %24 = arith.divf %23, %22 : vector<500x3xf32>
    %c0_16 = arith.constant 0 : index
    %c0_17 = arith.constant 0 : index
    %25 = vector.load %arg6[%c0_16, %c0_17] : memref<500x3xf32, #tpu.memory_space<vmem>>, vector<500x3xf32>
    tpu.vector_store %arg6[%c0_16, %c0_17], %24 {strides = array<i32>} : memref<500x3xf32, #tpu.memory_space<vmem>>, vector<500x3xf32>,
    return
  }
  func.func @transform_0(%arg0: i32) -> (i32, i32) {
    %c0_i32 = arith.constant 0 : i32
    %c0_i32_0 = arith.constant 0 : i32
    %c0_i32_1 = arith.constant 0 : i32
    return %c0_i32, %c0_i32_0 : i32, i32
  }
  func.func @transform_1(%arg0: i32) -> (i32, i32) {
    %c0_i32 = arith.constant 0 : i32
    %c0_i32_0 = arith.constant 0 : i32
    %c0_i32_1 = arith.constant 0 : i32
    return %c0_i32, %c0_i32_0 : i32, i32
  }
  func.func @transform_2(%arg0: i32) -> (i32, i32) {
    %c0_i32 = arith.constant 0 : i32
    %c0_i32_0 = arith.constant 0 : i32
    %c0_i32_1 = arith.constant 0 : i32
    return %c0_i32, %c0_i32_0 : i32, i32
  }
  func.func @transform_3(%arg0: i32) -> (i32, i32) {
    %c0_i32 = arith.constant 0 : i32
    %c0_i32_0 = arith.constant 0 : i32
    %c0_i32_1 = arith.constant 0 : i32
    return %c0_i32, %c0_i32_0 : i32, i32
  }
  func.func @transform_4(%arg0: i32) -> (i32, i32) {
    %c0_i32 = arith.constant 0 : i32
    %c0_i32_0 = arith.constant 0 : i32
    %c0_i32_1 = arith.constant 0 : i32
    return %c0_i32, %c0_i32_0 : i32, i32
  }
  func.func @transform_5(%arg0: i32) -> (i32, i32) {
    %c0_i32 = arith.constant 0 : i32
    %c0_i32_0 = arith.constant 0 : i32
    %c0_i32_1 = arith.constant 0 : i32
    return %c0_i32, %c0_i32_0 : i32, i32
  }
}

</mosaic_0001>

<llo_original>
// kernel: tpu_custom_call.1
$region0: #{tpu_custom_call.1}
  #allocation0 [shape = 'u32[]', space=smem, size = 0x4, offset = 0x4, fixed_abs, tag = 'smem constant byte address 0x4 - core index']
  #allocation1 [shape = 'u32[72,128]{1,0:T(1,128)}', space=vmem, size = 0x9000, scoped, tag = 'internal scratch']
  %s0 = inlined_call_operand.vmem [shape: f32[500,5], index: 0, kind: input, shape index: {}]
  %s1 = inlined_call_operand.vmem [shape: f32[5,32], index: 1, kind: input, shape index: {}]
  %s2 = inlined_call_operand.vmem [shape: f32[1,32], index: 2, kind: input, shape index: {}]
  %s3 = inlined_call_operand.vmem [shape: f32[32,3], index: 3, kind: input, shape index: {}]
  %s4 = inlined_call_operand.vmem [shape: f32[1,3], index: 4, kind: input, shape index: {}]
  %s5 = inlined_call_operand.vmem [shape: f32[500,3], index: 5, kind: output, shape index: {}]
  %s6 = sld [smem:[#allocation0]]
  $region30: #{tpu_custom_call.1} parent=0
    _
  %s8 = ssub.s32 1, %s6
  %s9 = scalar_select 0, %s8, %s6
  // Predicated region
  $region2: #{tpu_custom_call.1} parent=0 // pred_check
    _
  $region3: #{tpu_custom_call.1} parent=0 // pred_check_branch
    %11 = sbr.rel (0) target = $region5
  $region4: #{tpu_custom_call.1} parent=0 // pred_region
    _
  $region5: #{tpu_custom_call.1} parent=0 // pred_fallthru
    _
  // Predicated region
  $region6: #{tpu_custom_call.1} parent=0 // pred_check
    _
  $region7: #{tpu_custom_call.1} parent=0 // pred_check_branch
    %13 = sbr.rel (0) target = $region9
  $region8: #{tpu_custom_call.1} parent=0 // pred_region
    _
  $region9: #{tpu_custom_call.1} parent=0 // pred_fallthru
    _
  // Predicated region
  $region10: #{tpu_custom_call.1} parent=0 // pred_check
    _
  $region11: #{tpu_custom_call.1} parent=0 // pred_check_branch
    %15 = sbr.rel (0) target = $region13
  $region12: #{tpu_custom_call.1} parent=0 // pred_region
    _
  $region13: #{tpu_custom_call.1} parent=0 // pred_fallthru
    _
  // Predicated region
  $region14: #{tpu_custom_call.1} parent=0 // pred_check
    _
  $region15: #{tpu_custom_call.1} parent=0 // pred_check_branch
    %17 = sbr.rel (0) target = $region17
  $region16: #{tpu_custom_call.1} parent=0 // pred_region
    _
  $region17: #{tpu_custom_call.1} parent=0 // pred_fallthru
    _
  // Predicated region
  $region18: #{tpu_custom_call.1} parent=0 // pred_check
    _
  $region19: #{tpu_custom_call.1} parent=0 // pred_check_branch
    %19 = sbr.rel (0) target = $region21
  $region20: #{tpu_custom_call.1} parent=0 // pred_region
    _
  $region21: #{tpu_custom_call.1} parent=0 // pred_fallthru
    _
  %v20 = vld [vmem:[%s0] sm:$0xff]
  %v21 = vld [vmem:[%s0 + $0x8] sm:$0xff]
  %v22 = vld [vmem:[%s0 + $0x10] sm:$0xff]
  %v23 = vld [vmem:[%s0 + $0x18] sm:$0xff]
  %v24 = vld [vmem:[%s0 + $0x20] sm:$0xff]
  %v25 = vld [vmem:[%s0 + $0x28] sm:$0xff]
  %v26 = vld [vmem:[%s0 + $0x30] sm:$0xff]
  %v27 = vld [vmem:[%s0 + $0x38] sm:$0xff]
  %v28 = vld [vmem:[%s0 + $0x40] sm:$0xff]
  %v29 = vld [vmem:[%s0 + $0x48] sm:$0xff]
  %v30 = vld [vmem:[%s0 + $0x50] sm:$0xff]
  %v31 = vld [vmem:[%s0 + $0x58] sm:$0xff]
  %v32 = vld [vmem:[%s0 + $0x60] sm:$0xff]
  %v33 = vld [vmem:[%s0 + $0x68] sm:$0xff]
  %v34 = vld [vmem:[%s0 + $0x70] sm:$0xff]
  %v35 = vld [vmem:[%s0 + $0x78] sm:$0xff]
  %v36 = vld [vmem:[%s0 + $0x80] sm:$0xff]
  %v37 = vld [vmem:[%s0 + $0x88] sm:$0xff]
  %v38 = vld [vmem:[%s0 + $0x90] sm:$0xff]
  %v39 = vld [vmem:[%s0 + $0x98] sm:$0xff]
  %v40 = vld [vmem:[%s0 + $0xa0] sm:$0xff]
  %v41 = vld [vmem:[%s0 + $0xa8] sm:$0xff]
  %v42 = vld [vmem:[%s0 + $0xb0] sm:$0xff]
  %v43 = vld [vmem:[%s0 + $0xb8] sm:$0xff]
  %v44 = vld [vmem:[%s0 + $0xc0] sm:$0xff]
  %v45 = vld [vmem:[%s0 + $0xc8] sm:$0xff]
  %v46 = vld [vmem:[%s0 + $0xd0] sm:$0xff]
  %v47 = vld [vmem:[%s0 + $0xd8] sm:$0xff]
  %v48 = vld [vmem:[%s0 + $0xe0] sm:$0xff]
  %v49 = vld [vmem:[%s0 + $0xe8] sm:$0xff]
  %v50 = vld [vmem:[%s0 + $0xf0] sm:$0xff]
  %v51 = vld [vmem:[%s0 + $0xf8] sm:$0xff]
  %v52 = vld [vmem:[%s0 + $0x100] sm:$0xff]
  %v53 = vld [vmem:[%s0 + $0x108] sm:$0xff]
  %v54 = vld [vmem:[%s0 + $0x110] sm:$0xff]
  %v55 = vld [vmem:[%s0 + $0x118] sm:$0xff]
  %v56 = vld [vmem:[%s0 + $0x120] sm:$0xff]
  %v57 = vld [vmem:[%s0 + $0x128] sm:$0xff]
  %v58 = vld [vmem:[%s0 + $0x130] sm:$0xff]
  %v59 = vld [vmem:[%s0 + $0x138] sm:$0xff]
  %v60 = vld [vmem:[%s0 + $0x140] sm:$0xff]
  %v61 = vld [vmem:[%s0 + $0x148] sm:$0xff]
  %v62 = vld [vmem:[%s0 + $0x150] sm:$0xff]
  %v63 = vld [vmem:[%s0 + $0x158] sm:$0xff]
  %v64 = vld [vmem:[%s0 + $0x160] sm:$0xff]
  %v65 = vld [vmem:[%s0 + $0x168] sm:$0xff]
  %v66 = vld [vmem:[%s0 + $0x170] sm:$0xff]
  %v67 = vld [vmem:[%s0 + $0x178] sm:$0xff]
  %v68 = vld [vmem:[%s0 + $0x180] sm:$0xff]
  %v69 = vld [vmem:[%s0 + $0x188] sm:$0xff]
  %v70 = vld [vmem:[%s0 + $0x190] sm:$0xff]
  %v71 = vld [vmem:[%s0 + $0x198] sm:$0xff]
  %v72 = vld [vmem:[%s0 + $0x1a0] sm:$0xff]
  %v73 = vld [vmem:[%s0 + $0x1a8] sm:$0xff]
  %v74 = vld [vmem:[%s0 + $0x1b0] sm:$0xff]
  %v75 = vld [vmem:[%s0 + $0x1b8] sm:$0xff]
  %v76 = vld [vmem:[%s0 + $0x1c0] sm:$0xff]
  %v77 = vld [vmem:[%s0 + $0x1c8] sm:$0xff]
  %v78 = vld [vmem:[%s0 + $0x1d0] sm:$0xff]
  %v79 = vld [vmem:[%s0 + $0x1d8] sm:$0xff]
  %v80 = vld [vmem:[%s0 + $0x1e0] sm:$0xff]
  %v81 = vld [vmem:[%s0 + $0x1e8] sm:$0xff]
  %v82 = vld [vmem:[%s0 + $0x1f0] sm:$0xf]
  %v83 = vld [vmem:[%s1] sm:$0x1f]
  %v84 = vld [vmem:[%s2] sm:$0x1]
  %v86 = vperm.slane %v84, 0
  %vm88 = vcmask 39936
  %v90 = vsel %vm88, %v20, 0
  %v93 = vsel %vm88, %v21, 0
  %v96 = vsel %vm88, %v22, 0
  %v99 = vsel %vm88, %v23, 0
  %v102 = vsel %vm88, %v24, 0
  %v105 = vsel %vm88, %v25, 0
  %v108 = vsel %vm88, %v26, 0
  %v111 = vsel %vm88, %v27, 0
  %v114 = vsel %vm88, %v28, 0
  %v117 = vsel %vm88, %v29, 0
  %v120 = vsel %vm88, %v30, 0
  %v123 = vsel %vm88, %v31, 0
  %v126 = vsel %vm88, %v32, 0
  %v129 = vsel %vm88, %v33, 0
  %v132 = vsel %vm88, %v34, 0
  %v135 = vsel %vm88, %v35, 0
  %v138 = vsel %vm88, %v36, 0
  %v141 = vsel %vm88, %v37, 0
  %v144 = vsel %vm88, %v38, 0
  %v147 = vsel %vm88, %v39, 0
  %v150 = vsel %vm88, %v40, 0
  %v153 = vsel %vm88, %v41, 0
  %v156 = vsel %vm88, %v42, 0
  %v159 = vsel %vm88, %v43, 0
  %v162 = vsel %vm88, %v44, 0
  %v165 = vsel %vm88, %v45, 0
  %v168 = vsel %vm88, %v46, 0
  %v171 = vsel %vm88, %v47, 0
  %v174 = vsel %vm88, %v48, 0
  %v177 = vsel %vm88, %v49, 0
  %v180 = vsel %vm88, %v50, 0
  %v183 = vsel %vm88, %v51, 0
  %v186 = vsel %vm88, %v52, 0
  %v189 = vsel %vm88, %v53, 0
  %v192 = vsel %vm88, %v54, 0
  %v195 = vsel %vm88, %v55, 0
  %v198 = vsel %vm88, %v56, 0
  %v201 = vsel %vm88, %v57, 0
  %v204 = vsel %vm88, %v58, 0
  %v207 = vsel %vm88, %v59, 0
  %v210 = vsel %vm88, %v60, 0
  %v213 = vsel %vm88, %v61, 0
  %v216 = vsel %vm88, %v62, 0
  %v219 = vsel %vm88, %v63, 0
  %v222 = vsel %vm88, %v64, 0
  %v225 = vsel %vm88, %v65, 0
  %v228 = vsel %vm88, %v66, 0
  %v231 = vsel %vm88, %v67, 0
  %v234 = vsel %vm88, %v68, 0
  %v237 = vsel %vm88, %v69, 0
  %v240 = vsel %vm88, %v70, 0
  %v243 = vsel %vm88, %v71, 0
  %v246 = vsel %vm88, %v72, 0
  %v249 = vsel %vm88, %v73, 0
  %v252 = vsel %vm88, %v74, 0
  %v255 = vsel %vm88, %v75, 0
  %v258 = vsel %vm88, %v76, 0
  %v261 = vsel %vm88, %v77, 0
  %v264 = vsel %vm88, %v78, 0
  %v267 = vsel %vm88, %v79, 0
  %v270 = vsel %vm88, %v80, 0
  %v273 = vsel %vm88, %v81, 0
  %v276 = vsel %vm88, %v82, 0
  %vm278 = vcmask 1044480
  %v280 = vsel %vm278, %v83, 0
  %282 = vmatpush.msra.mxu0 0.0
  %283 = vmatpush.msra.mxu0 0.0
  %284 = vmatpush.msra.mxu0 0.0
  %285 = vmatpush.msra.mxu0 0.0
  %286 = vmatpush.msra.mxu0 0.0
  %287 = vmatpush.msra.mxu0 0.0
  %288 = vmatpush.msra.mxu0 0.0
  %289 = vmatpush.msra.mxu0 0.0
  %290 = vmatpush.msra.mxu0 0.0
  %291 = vmatpush.msra.mxu0 0.0
  %292 = vmatpush.msra.mxu0 0.0
  %293 = vmatpush.msra.mxu0 0.0
  %294 = vmatpush.msra.mxu0 0.0
  %295 = vmatpush.msra.mxu0 0.0
  %296 = vmatpush.msra.mxu0 0.0
  %297 = vmatpush.msra.mxu0 %v280
  %298 = vmatmul.f32.gmra.mxu0 %v90
  %v299 = vpop.f32.mrf.mxu0
  %v300 = vadd.f32 %v86, %v299
  %301 = vmatmul.f32.gmra.mxu0 %v93
  %v302 = vpop.f32.mrf.mxu0
  %v303 = vadd.f32 %v86, %v302
  %304 = vmatmul.f32.gmra.mxu0 %v96
  %v305 = vpop.f32.mrf.mxu0
  %v306 = vadd.f32 %v86, %v305
  %307 = vmatmul.f32.gmra.mxu0 %v99
  %v308 = vpop.f32.mrf.mxu0
  %v309 = vadd.f32 %v86, %v308
  %310 = vmatmul.f32.gmra.mxu0 %v102
  %v311 = vpop.f32.mrf.mxu0
  %v312 = vadd.f32 %v86, %v311
  %313 = vmatmul.f32.gmra.mxu0 %v105
  %v314 = vpop.f32.mrf.mxu0
  %v315 = vadd.f32 %v86, %v314
  %316 = vmatmul.f32.gmra.mxu0 %v108
  %v317 = vpop.f32.mrf.mxu0
  %v318 = vadd.f32 %v86, %v317
  %319 = vmatmul.f32.gmra.mxu0 %v111
  %v320 = vpop.f32.mrf.mxu0
  %v321 = vadd.f32 %v86, %v320
  %322 = vmatmul.f32.gmra.mxu0 %v114
  %v323 = vpop.f32.mrf.mxu0
  %v324 = vadd.f32 %v86, %v323
  %325 = vmatmul.f32.gmra.mxu0 %v117
  %v326 = vpop.f32.mrf.mxu0
  %v327 = vadd.f32 %v86, %v326
  %328 = vmatmul.f32.gmra.mxu0 %v120
  %v329 = vpop.f32.mrf.mxu0
  %v330 = vadd.f32 %v86, %v329
  %331 = vmatmul.f32.gmra.mxu0 %v123
  %v332 = vpop.f32.mrf.mxu0
  %v333 = vadd.f32 %v86, %v332
  %334 = vmatmul.f32.gmra.mxu0 %v126
  %v335 = vpop.f32.mrf.mxu0
  %v336 = vadd.f32 %v86, %v335
  %337 = vmatmul.f32.gmra.mxu0 %v129
  %v338 = vpop.f32.mrf.mxu0
  %v339 = vadd.f32 %v86, %v338
  %340 = vmatmul.f32.gmra.mxu0 %v132
  %v341 = vpop.f32.mrf.mxu0
  %v342 = vadd.f32 %v86, %v341
  %343 = vmatmul.f32.gmra.mxu0 %v135
  %v344 = vpop.f32.mrf.mxu0
  %v345 = vadd.f32 %v86, %v344
  %346 = vmatmul.f32.gmra.mxu0 %v138
  %v347 = vpop.f32.mrf.mxu0
  %v348 = vadd.f32 %v86, %v347
  %349 = vmatmul.f32.gmra.mxu0 %v141
  %v350 = vpop.f32.mrf.mxu0
  %v351 = vadd.f32 %v86, %v350
  %352 = vmatmul.f32.gmra.mxu0 %v144
  %v353 = vpop.f32.mrf.mxu0
  %v354 = vadd.f32 %v86, %v353
  %355 = vmatmul.f32.gmra.mxu0 %v147
  %v356 = vpop.f32.mrf.mxu0
  %v357 = vadd.f32 %v86, %v356
  %358 = vmatmul.f32.gmra.mxu0 %v150
  %v359 = vpop.f32.mrf.mxu0
  %v360 = vadd.f32 %v86, %v359
  %361 = vmatmul.f32.gmra.mxu0 %v153
  %v362 = vpop.f32.mrf.mxu0
  %v363 = vadd.f32 %v86, %v362
  %364 = vmatmul.f32.gmra.mxu0 %v156
  %v365 = vpop.f32.mrf.mxu0
  %v366 = vadd.f32 %v86, %v365
  %367 = vmatmul.f32.gmra.mxu0 %v159
  %v368 = vpop.f32.mrf.mxu0
  %v369 = vadd.f32 %v86, %v368
  %370 = vmatmul.f32.gmra.mxu0 %v162
  %v371 = vpop.f32.mrf.mxu0
  %v372 = vadd.f32 %v86, %v371
  %373 = vmatmul.f32.gmra.mxu0 %v165
  %v374 = vpop.f32.mrf.mxu0
  %v375 = vadd.f32 %v86, %v374
  %376 = vmatmul.f32.gmra.mxu0 %v168
  %v377 = vpop.f32.mrf.mxu0
  %v378 = vadd.f32 %v86, %v377
  %379 = vmatmul.f32.gmra.mxu0 %v171
  %v380 = vpop.f32.mrf.mxu0
  %v381 = vadd.f32 %v86, %v380
  %382 = vmatmul.f32.gmra.mxu0 %v174
  %v383 = vpop.f32.mrf.mxu0
  %v384 = vadd.f32 %v86, %v383
  %385 = vmatmul.f32.gmra.mxu0 %v177
  %v386 = vpop.f32.mrf.mxu0
  %v387 = vadd.f32 %v86, %v386
  %388 = vmatmul.f32.gmra.mxu0 %v180
  %v389 = vpop.f32.mrf.mxu0
  %v390 = vadd.f32 %v86, %v389
  %391 = vmatmul.f32.gmra.mxu0 %v183
  %v392 = vpop.f32.mrf.mxu0
  %v393 = vadd.f32 %v86, %v392
  %394 = vmatmul.f32.gmra.mxu0 %v186
  %v395 = vpop.f32.mrf.mxu0
  %v396 = vadd.f32 %v86, %v395
  %397 = vmatmul.f32.gmra.mxu0 %v189
  %v398 = vpop.f32.mrf.mxu0
  %v399 = vadd.f32 %v86, %v398
  %400 = vmatmul.f32.gmra.mxu0 %v192
  %v401 = vpop.f32.mrf.mxu0
  %v402 = vadd.f32 %v86, %v401
  %403 = vmatmul.f32.gmra.mxu0 %v195
  %v404 = vpop.f32.mrf.mxu0
  %v405 = vadd.f32 %v86, %v404
  %406 = vmatmul.f32.gmra.mxu0 %v198
  %v407 = vpop.f32.mrf.mxu0
  %v408 = vadd.f32 %v86, %v407
  %409 = vmatmul.f32.gmra.mxu0 %v201
  %v410 = vpop.f32.mrf.mxu0
  %v411 = vadd.f32 %v86, %v410
  %412 = vmatmul.f32.gmra.mxu0 %v204
  %v413 = vpop.f32.mrf.mxu0
  %v414 = vadd.f32 %v86, %v413
  %415 = vmatmul.f32.gmra.mxu0 %v207
  %v416 = vpop.f32.mrf.mxu0
  %v417 = vadd.f32 %v86, %v416
  %418 = vmatmul.f32.gmra.mxu0 %v210
  %v419 = vpop.f32.mrf.mxu0
  %v420 = vadd.f32 %v86, %v419
  %421 = vmatmul.f32.gmra.mxu0 %v213
  %v422 = vpop.f32.mrf.mxu0
  %v423 = vadd.f32 %v86, %v422
  %424 = vmatmul.f32.gmra.mxu0 %v216
  %v425 = vpop.f32.mrf.mxu0
  %v426 = vadd.f32 %v86, %v425
  %427 = vmatmul.f32.gmra.mxu0 %v219
  %v428 = vpop.f32.mrf.mxu0
  %v429 = vadd.f32 %v86, %v428
  %430 = vmatmul.f32.gmra.mxu0 %v222
  %v431 = vpop.f32.mrf.mxu0
  %v432 = vadd.f32 %v86, %v431
  %433 = vmatmul.f32.gmra.mxu0 %v225
  %v434 = vpop.f32.mrf.mxu0
  %v435 = vadd.f32 %v86, %v434
  %436 = vmatmul.f32.gmra.mxu0 %v228
  %v437 = vpop.f32.mrf.mxu0
  %v438 = vadd.f32 %v86, %v437
  %439 = vmatmul.f32.gmra.mxu0 %v231
  %v440 = vpop.f32.mrf.mxu0
  %v441 = vadd.f32 %v86, %v440
  %442 = vmatmul.f32.gmra.mxu0 %v234
  %v443 = vpop.f32.mrf.mxu0
  %v444 = vadd.f32 %v86, %v443
  %445 = vmatmul.f32.gmra.mxu0 %v237
  %v446 = vpop.f32.mrf.mxu0
  %v447 = vadd.f32 %v86, %v446
  %448 = vmatmul.f32.gmra.mxu0 %v240
  %v449 = vpop.f32.mrf.mxu0
  %v450 = vadd.f32 %v86, %v449
  %451 = vmatmul.f32.gmra.mxu0 %v243
  %v452 = vpop.f32.mrf.mxu0
  %v453 = vadd.f32 %v86, %v452
  %454 = vmatmul.f32.gmra.mxu0 %v246
  %v455 = vpop.f32.mrf.mxu0
  %v456 = vadd.f32 %v86, %v455
  %457 = vmatmul.f32.gmra.mxu0 %v249
  %v458 = vpop.f32.mrf.mxu0
  %v459 = vadd.f32 %v86, %v458
  %460 = vmatmul.f32.gmra.mxu0 %v252
  %v461 = vpop.f32.mrf.mxu0
  %v462 = vadd.f32 %v86, %v461
  %463 = vmatmul.f32.gmra.mxu0 %v255
  %v464 = vpop.f32.mrf.mxu0
  %v465 = vadd.f32 %v86, %v464
  %466 = vmatmul.f32.gmra.mxu0 %v258
  %v467 = vpop.f32.mrf.mxu0
  %v468 = vadd.f32 %v86, %v467
  %469 = vmatmul.f32.gmra.mxu0 %v261
  %v470 = vpop.f32.mrf.mxu0
  %v471 = vadd.f32 %v86, %v470
  %472 = vmatmul.f32.gmra.mxu0 %v264
  %v473 = vpop.f32.mrf.mxu0
  %v474 = vadd.f32 %v86, %v473
  %475 = vmatmul.f32.gmra.mxu0 %v267
  %v476 = vpop.f32.mrf.mxu0
  %v477 = vadd.f32 %v86, %v476
  %478 = vmatmul.f32.gmra.mxu0 %v270
  %v479 = vpop.f32.mrf.mxu0
  %v480 = vadd.f32 %v86, %v479
  %481 = vmatmul.f32.gmra.mxu0 %v273
  %v482 = vpop.f32.mrf.mxu0
  %v483 = vadd.f32 %v86, %v482
  %484 = vmatmul.f32.gmra.mxu0 %v276
  %v485 = vpop.f32.mrf.mxu0
  %v486 = vadd.f32 %v86, %v485
  %487 = vdwg.mxu0
  %v488 = vsub.f32 0.0, %v300
  %v489 = vsub.f32 0.0, %v303
  %v490 = vsub.f32 0.0, %v306
  %v491 = vsub.f32 0.0, %v309
  %v492 = vsub.f32 0.0, %v312
  %v493 = vsub.f32 0.0, %v315
  %v494 = vsub.f32 0.0, %v318
  %v495 = vsub.f32 0.0, %v321
  %v496 = vsub.f32 0.0, %v324
  %v497 = vsub.f32 0.0, %v327
  %v498 = vsub.f32 0.0, %v330
  %v499 = vsub.f32 0.0, %v333
  %v500 = vsub.f32 0.0, %v336
  %v501 = vsub.f32 0.0, %v339
  %v502 = vsub.f32 0.0, %v342
  %v503 = vsub.f32 0.0, %v345
  %v504 = vsub.f32 0.0, %v348
  %v505 = vsub.f32 0.0, %v351
  %v506 = vsub.f32 0.0, %v354
  %v507 = vsub.f32 0.0, %v357
  %v508 = vsub.f32 0.0, %v360
  %v509 = vsub.f32 0.0, %v363
  %v510 = vsub.f32 0.0, %v366
  %v511 = vsub.f32 0.0, %v369
  %v512 = vsub.f32 0.0, %v372
  %v513 = vsub.f32 0.0, %v375
  %v514 = vsub.f32 0.0, %v378
  %v515 = vsub.f32 0.0, %v381
  %v516 = vsub.f32 0.0, %v384
  %v517 = vsub.f32 0.0, %v387
  %v518 = vsub.f32 0.0, %v390
  %v519 = vsub.f32 0.0, %v393
  %v520 = vsub.f32 0.0, %v396
  %v521 = vsub.f32 0.0, %v399
  %v522 = vsub.f32 0.0, %v402
  %v523 = vsub.f32 0.0, %v405
  %v524 = vsub.f32 0.0, %v408
  %v525 = vsub.f32 0.0, %v411
  %v526 = vsub.f32 0.0, %v414
  %v527 = vsub.f32 0.0, %v417
  %v528 = vsub.f32 0.0, %v420
  %v529 = vsub.f32 0.0, %v423
  %v530 = vsub.f32 0.0, %v426
  %v531 = vsub.f32 0.0, %v429
  %v532 = vsub.f32 0.0, %v432
  %v533 = vsub.f32 0.0, %v435
  %v534 = vsub.f32 0.0, %v438
  %v535 = vsub.f32 0.0, %v441
  %v536 = vsub.f32 0.0, %v444
  %v537 = vsub.f32 0.0, %v447
  %v538 = vsub.f32 0.0, %v450
  %v539 = vsub.f32 0.0, %v453
  %v540 = vsub.f32 0.0, %v456
  %v541 = vsub.f32 0.0, %v459
  %v542 = vsub.f32 0.0, %v462
  %v543 = vsub.f32 0.0, %v465
  %v544 = vsub.f32 0.0, %v468
  %v545 = vsub.f32 0.0, %v471
  %v546 = vsub.f32 0.0, %v474
  %v547 = vsub.f32 0.0, %v477
  %v548 = vsub.f32 0.0, %v480
  %v549 = vsub.f32 0.0, %v483
  %v550 = vsub.f32 0.0, %v486
  %v551 = vmul.f32 %v488, 1.442695
  %v552 = vpow.pop %v551
  %v553 = vmul.f32 %v489, 1.442695
  %v554 = vpow.pop %v553
  %v555 = vmul.f32 %v490, 1.442695
  %v556 = vpow.pop %v555
  %v557 = vmul.f32 %v491, 1.442695
  %v558 = vpow.pop %v557
  %v559 = vmul.f32 %v492, 1.442695
  %v560 = vpow.pop %v559
  %v561 = vmul.f32 %v493, 1.442695
  %v562 = vpow.pop %v561
  %v563 = vmul.f32 %v494, 1.442695
  %v564 = vpow.pop %v563
  %v565 = vmul.f32 %v495, 1.442695
  %v566 = vpow.pop %v565
  %v567 = vmul.f32 %v496, 1.442695
  %v568 = vpow.pop %v567
  %v569 = vmul.f32 %v497, 1.442695
  %v570 = vpow.pop %v569
  %v571 = vmul.f32 %v498, 1.442695
  %v572 = vpow.pop %v571
  %v573 = vmul.f32 %v499, 1.442695
  %v574 = vpow.pop %v573
  %v575 = vmul.f32 %v500, 1.442695
  %v576 = vpow.pop %v575
  %v577 = vmul.f32 %v501, 1.442695
  %v578 = vpow.pop %v577
  %v579 = vmul.f32 %v502, 1.442695
  %v580 = vpow.pop %v579
  %v581 = vmul.f32 %v503, 1.442695
  %v582 = vpow.pop %v581
  %v583 = vmul.f32 %v504, 1.442695
  %v584 = vpow.pop %v583
  %v585 = vmul.f32 %v505, 1.442695
  %v586 = vpow.pop %v585
  %v587 = vmul.f32 %v506, 1.442695
  %v588 = vpow.pop %v587
  %v589 = vmul.f32 %v507, 1.442695
  %v590 = vpow.pop %v589
  %v591 = vmul.f32 %v508, 1.442695
  %v592 = vpow.pop %v591
  %v593 = vmul.f32 %v509, 1.442695
  %v594 = vpow.pop %v593
  %v595 = vmul.f32 %v510, 1.442695
  %v596 = vpow.pop %v595
  %v597 = vmul.f32 %v511, 1.442695
  %v598 = vpow.pop %v597
  %v599 = vmul.f32 %v512, 1.442695
  %v600 = vpow.pop %v599
  %v601 = vmul.f32 %v513, 1.442695
  %v602 = vpow.pop %v601
  %v603 = vmul.f32 %v514, 1.442695
  %v604 = vpow.pop %v603
  %v605 = vmul.f32 %v515, 1.442695
  %v606 = vpow.pop %v605
  %v607 = vmul.f32 %v516, 1.442695
  %v608 = vpow.pop %v607
  %v609 = vmul.f32 %v517, 1.442695
  %v610 = vpow.pop %v609
  %v611 = vmul.f32 %v518, 1.442695
  %v612 = vpow.pop %v611
  %v613 = vmul.f32 %v519, 1.442695
  %v614 = vpow.pop %v613
  %v615 = vmul.f32 %v520, 1.442695
  %v616 = vpow.pop %v615
  %v617 = vmul.f32 %v521, 1.442695
  %v618 = vpow.pop %v617
  %v619 = vmul.f32 %v522, 1.442695
  %v620 = vpow.pop %v619
  %v621 = vmul.f32 %v523, 1.442695
  %v622 = vpow.pop %v621
  %v623 = vmul.f32 %v524, 1.442695
  %v624 = vpow.pop %v623
  %v625 = vmul.f32 %v525, 1.442695
  %v626 = vpow.pop %v625
  %v627 = vmul.f32 %v526, 1.442695
  %v628 = vpow.pop %v627
  %v629 = vmul.f32 %v527, 1.442695
  %v630 = vpow.pop %v629
  %v631 = vmul.f32 %v528, 1.442695
  %v632 = vpow.pop %v631
  %v633 = vmul.f32 %v529, 1.442695
  %v634 = vpow.pop %v633
  %v635 = vmul.f32 %v530, 1.442695
  %v636 = vpow.pop %v635
  %v637 = vmul.f32 %v531, 1.442695
  %v638 = vpow.pop %v637
  %v639 = vmul.f32 %v532, 1.442695
  %v640 = vpow.pop %v639
  %v641 = vmul.f32 %v533, 1.442695
  %v642 = vpow.pop %v641
  %v643 = vmul.f32 %v534, 1.442695
  %v644 = vpow.pop %v643
  %v645 = vmul.f32 %v535, 1.442695
  %v646 = vpow.pop %v645
  %v647 = vmul.f32 %v536, 1.442695
  %v648 = vpow.pop %v647
  %v649 = vmul.f32 %v537, 1.442695
  %v650 = vpow.pop %v649
  %v651 = vmul.f32 %v538, 1.442695
  %v652 = vpow.pop %v651
  %v653 = vmul.f32 %v539, 1.442695
  %v654 = vpow.pop %v653
  %v655 = vmul.f32 %v540, 1.442695
  %v656 = vpow.pop %v655
  %v657 = vmul.f32 %v541, 1.442695
  %v658 = vpow.pop %v657
  %v659 = vmul.f32 %v542, 1.442695
  %v660 = vpow.pop %v659
  %v661 = vmul.f32 %v543, 1.442695
  %v662 = vpow.pop %v661
  %v663 = vmul.f32 %v544, 1.442695
  %v664 = vpow.pop %v663
  %v665 = vmul.f32 %v545, 1.442695
  %v666 = vpow.pop %v665
  %v667 = vmul.f32 %v546, 1.442695
  %v668 = vpow.pop %v667
  %v669 = vmul.f32 %v547, 1.442695
  %v670 = vpow.pop %v669
  %v671 = vmul.f32 %v548, 1.442695
  %v672 = vpow.pop %v671
  %v673 = vmul.f32 %v549, 1.442695
  %v674 = vpow.pop %v673
  %v675 = vmul.f32 %v550, 1.442695
  %v676 = vpow.pop %v675
  %v677 = vadd.f32 %v552, 1.0
  %v678 = vadd.f32 %v554, 1.0
  %v679 = vadd.f32 %v556, 1.0
  %v680 = vadd.f32 %v558, 1.0
  %v681 = vadd.f32 %v560, 1.0
  %v682 = vadd.f32 %v562, 1.0
  %v683 = vadd.f32 %v564, 1.0
  %v684 = vadd.f32 %v566, 1.0
  %v685 = vadd.f32 %v568, 1.0
  %v686 = vadd.f32 %v570, 1.0
  %v687 = vadd.f32 %v572, 1.0
  %v688 = vadd.f32 %v574, 1.0
  %v689 = vadd.f32 %v576, 1.0
  %v690 = vadd.f32 %v578, 1.0
  %v691 = vadd.f32 %v580, 1.0
  %v692 = vadd.f32 %v582, 1.0
  %v693 = vadd.f32 %v584, 1.0
  %v694 = vadd.f32 %v586, 1.0
  %v695 = vadd.f32 %v588, 1.0
  %v696 = vadd.f32 %v590, 1.0
  %v697 = vadd.f32 %v592, 1.0
  %v698 = vadd.f32 %v594, 1.0
  %v699 = vadd.f32 %v596, 1.0
  %v700 = vadd.f32 %v598, 1.0
  %v701 = vadd.f32 %v600, 1.0
  %v702 = vadd.f32 %v602, 1.0
  %v703 = vadd.f32 %v604, 1.0
  %v704 = vadd.f32 %v606, 1.0
  %v705 = vadd.f32 %v608, 1.0
  %v706 = vadd.f32 %v610, 1.0
  %v707 = vadd.f32 %v612, 1.0
  %v708 = vadd.f32 %v614, 1.0
  %v709 = vadd.f32 %v616, 1.0
  %v710 = vadd.f32 %v618, 1.0
  %v711 = vadd.f32 %v620, 1.0
  %v712 = vadd.f32 %v622, 1.0
  %v713 = vadd.f32 %v624, 1.0
  %v714 = vadd.f32 %v626, 1.0
  %v715 = vadd.f32 %v628, 1.0
  %v716 = vadd.f32 %v630, 1.0
  %v717 = vadd.f32 %v632, 1.0
  %v718 = vadd.f32 %v634, 1.0
  %v719 = vadd.f32 %v636, 1.0
  %v720 = vadd.f32 %v638, 1.0
  %v721 = vadd.f32 %v640, 1.0
  %v722 = vadd.f32 %v642, 1.0
  %v723 = vadd.f32 %v644, 1.0
  %v724 = vadd.f32 %v646, 1.0
  %v725 = vadd.f32 %v648, 1.0
  %v726 = vadd.f32 %v650, 1.0
  %v727 = vadd.f32 %v652, 1.0
  %v728 = vadd.f32 %v654, 1.0
  %v729 = vadd.f32 %v656, 1.0
  %v730 = vadd.f32 %v658, 1.0
  %v731 = vadd.f32 %v660, 1.0
  %v732 = vadd.f32 %v662, 1.0
  %v733 = vadd.f32 %v664, 1.0
  %v734 = vadd.f32 %v666, 1.0
  %v735 = vadd.f32 %v668, 1.0
  %v736 = vadd.f32 %v670, 1.0
  %v737 = vadd.f32 %v672, 1.0
  %v738 = vadd.f32 %v674, 1.0
  %v739 = vadd.f32 %v676, 1.0
  %v740 = vrcp.pop %v677
  %v741 = vmul.f32 %v677, %v740
  %v742 = vsub.f32 1.0, %v741
  %v743 = vmul.f32 %v740, %v742
  %v744 = vadd.f32 %v740, %v743
  %vm745 = vweird.f32 %v677
  %vm746 = vweird.f32 %v740
  %vm747 = vmor %vm745, %vm746
  %v748 = vsel %vm747, %v740, %v744
  %v749 = vand.u32 2147483647, %v677
  %vm750 = vcmp.eq.f32.partialorder %v749, 8.507059e+37
  %v751 = vand.u32 %v677, 2147483648
  %v752 = vor.u32 1.1754944e-38, %v751
  %v753 = vsel %vm750, %v752, %v748
  %v754 = vmul.f32 1.0, %v753
  %v755 = vrcp.pop %v678
  %v756 = vmul.f32 %v678, %v755
  %v757 = vsub.f32 1.0, %v756
  %v758 = vmul.f32 %v755, %v757
  %v759 = vadd.f32 %v755, %v758
  %vm760 = vweird.f32 %v678
  %vm761 = vweird.f32 %v755
  %vm762 = vmor %vm760, %vm761
  %v763 = vsel %vm762, %v755, %v759
  %v764 = vand.u32 2147483647, %v678
  %vm765 = vcmp.eq.f32.partialorder %v764, 8.507059e+37
  %v766 = vand.u32 %v678, 2147483648
  %v767 = vor.u32 1.1754944e-38, %v766
  %v768 = vsel %vm765, %v767, %v763
  %v769 = vmul.f32 1.0, %v768
  %v770 = vrcp.pop %v679
  %v771 = vmul.f32 %v679, %v770
  %v772 = vsub.f32 1.0, %v771
  %v773 = vmul.f32 %v770, %v772
  %v774 = vadd.f32 %v770, %v773
  %vm775 = vweird.f32 %v679
  %vm776 = vweird.f32 %v770
  %vm777 = vmor %vm775, %vm776
  %v778 = vsel %vm777, %v770, %v774
  %v779 = vand.u32 2147483647, %v679
  %vm780 = vcmp.eq.f32.partialorder %v779, 8.507059e+37
  %v781 = vand.u32 %v679, 2147483648
  %v782 = vor.u32 1.1754944e-38, %v781
  %v783 = vsel %vm780, %v782, %v778
  %v784 = vmul.f32 1.0, %v783
  %v785 = vrcp.pop %v680
  %v786 = vmul.f32 %v680, %v785
  %v787 = vsub.f32 1.0, %v786
  %v788 = vmul.f32 %v785, %v787
  %v789 = vadd.f32 %v785, %v788
  %vm790 = vweird.f32 %v680
  %vm791 = vweird.f32 %v785
  %vm792 = vmor %vm790, %vm791
  %v793 = vsel %vm792, %v785, %v789
  %v794 = vand.u32 2147483647, %v680
  %vm795 = vcmp.eq.f32.partialorder %v794, 8.507059e+37
  %v796 = vand.u32 %v680, 2147483648
  %v797 = vor.u32 1.1754944e-38, %v796
  %v798 = vsel %vm795, %v797, %v793
  %v799 = vmul.f32 1.0, %v798
  %v800 = vrcp.pop %v681
  %v801 = vmul.f32 %v681, %v800
  %v802 = vsub.f32 1.0, %v801
  %v803 = vmul.f32 %v800, %v802
  %v804 = vadd.f32 %v800, %v803
  %vm805 = vweird.f32 %v681
  %vm806 = vweird.f32 %v800
  %vm807 = vmor %vm805, %vm806
  %v808 = vsel %vm807, %v800, %v804
  %v809 = vand.u32 2147483647, %v681
  %vm810 = vcmp.eq.f32.partialorder %v809, 8.507059e+37
  %v811 = vand.u32 %v681, 2147483648
  %v812 = vor.u32 1.1754944e-38, %v811
  %v813 = vsel %vm810, %v812, %v808
  %v814 = vmul.f32 1.0, %v813
  %v815 = vrcp.pop %v682
  %v816 = vmul.f32 %v682, %v815
  %v817 = vsub.f32 1.0, %v816
  %v818 = vmul.f32 %v815, %v817
  %v819 = vadd.f32 %v815, %v818
  %vm820 = vweird.f32 %v682
  %vm821 = vweird.f32 %v815
  %vm822 = vmor %vm820, %vm821
  %v823 = vsel %vm822, %v815, %v819
  %v824 = vand.u32 2147483647, %v682
  %vm825 = vcmp.eq.f32.partialorder %v824, 8.507059e+37
  %v826 = vand.u32 %v682, 2147483648
  %v827 = vor.u32 1.1754944e-38, %v826
  %v828 = vsel %vm825, %v827, %v823
  %v829 = vmul.f32 1.0, %v828
  %v830 = vrcp.pop %v683
  %v831 = vmul.f32 %v683, %v830
  %v832 = vsub.f32 1.0, %v831
  %v833 = vmul.f32 %v830, %v832
  %v834 = vadd.f32 %v830, %v833
  %vm835 = vweird.f32 %v683
  %vm836 = vweird.f32 %v830
  %vm837 = vmor %vm835, %vm836
  %v838 = vsel %vm837, %v830, %v834
  %v839 = vand.u32 2147483647, %v683
  %vm840 = vcmp.eq.f32.partialorder %v839, 8.507059e+37
  %v841 = vand.u32 %v683, 2147483648
  %v842 = vor.u32 1.1754944e-38, %v841
  %v843 = vsel %vm840, %v842, %v838
  %v844 = vmul.f32 1.0, %v843
  %v845 = vrcp.pop %v684
  %v846 = vmul.f32 %v684, %v845
  %v847 = vsub.f32 1.0, %v846
  %v848 = vmul.f32 %v845, %v847
  %v849 = vadd.f32 %v845, %v848
  %vm850 = vweird.f32 %v684
  %vm851 = vweird.f32 %v845
  %vm852 = vmor %vm850, %vm851
  %v853 = vsel %vm852, %v845, %v849
  %v854 = vand.u32 2147483647, %v684
  %vm855 = vcmp.eq.f32.partialorder %v854, 8.507059e+37
  %v856 = vand.u32 %v684, 2147483648
  %v857 = vor.u32 1.1754944e-38, %v856
  %v858 = vsel %vm855, %v857, %v853
  %v859 = vmul.f32 1.0, %v858
  %v860 = vrcp.pop %v685
  %v861 = vmul.f32 %v685, %v860
  %v862 = vsub.f32 1.0, %v861
  %v863 = vmul.f32 %v860, %v862
  %v864 = vadd.f32 %v860, %v863
  %vm865 = vweird.f32 %v685
  %vm866 = vweird.f32 %v860
  %vm867 = vmor %vm865, %vm866
  %v868 = vsel %vm867, %v860, %v864
  %v869 = vand.u32 2147483647, %v685
  %vm870 = vcmp.eq.f32.partialorder %v869, 8.507059e+37
  %v871 = vand.u32 %v685, 2147483648
  %v872 = vor.u32 1.1754944e-38, %v871
  %v873 = vsel %vm870, %v872, %v868
  %v874 = vmul.f32 1.0, %v873
  %v875 = vrcp.pop %v686
  %v876 = vmul.f32 %v686, %v875
  %v877 = vsub.f32 1.0, %v876
  %v878 = vmul.f32 %v875, %v877
  %v879 = vadd.f32 %v875, %v878
  %vm880 = vweird.f32 %v686
  %vm881 = vweird.f32 %v875
  %vm882 = vmor %vm880, %vm881
  %v883 = vsel %vm882, %v875, %v879
  %v884 = vand.u32 2147483647, %v686
  %vm885 = vcmp.eq.f32.partialorder %v884, 8.507059e+37
  %v886 = vand.u32 %v686, 2147483648
  %v887 = vor.u32 1.1754944e-38, %v886
  %v888 = vsel %vm885, %v887, %v883
  %v889 = vmul.f32 1.0, %v888
  %v890 = vrcp.pop %v687
  %v891 = vmul.f32 %v687, %v890
  %v892 = vsub.f32 1.0, %v891
  %v893 = vmul.f32 %v890, %v892
  %v894 = vadd.f32 %v890, %v893
  %vm895 = vweird.f32 %v687
  %vm896 = vweird.f32 %v890
  %vm897 = vmor %vm895, %vm896
  %v898 = vsel %vm897, %v890, %v894
  %v899 = vand.u32 2147483647, %v687
  %vm900 = vcmp.eq.f32.partialorder %v899, 8.507059e+37
  %v901 = vand.u32 %v687, 2147483648
  %v902 = vor.u32 1.1754944e-38, %v901
  %v903 = vsel %vm900, %v902, %v898
  %v904 = vmul.f32 1.0, %v903
  %v905 = vrcp.pop %v688
  %v906 = vmul.f32 %v688, %v905
  %v907 = vsub.f32 1.0, %v906
  %v908 = vmul.f32 %v905, %v907
  %v909 = vadd.f32 %v905, %v908
  %vm910 = vweird.f32 %v688
  %vm911 = vweird.f32 %v905
  %vm912 = vmor %vm910, %vm911
  %v913 = vsel %vm912, %v905, %v909
  %v914 = vand.u32 2147483647, %v688
  %vm915 = vcmp.eq.f32.partialorder %v914, 8.507059e+37
  %v916 = vand.u32 %v688, 2147483648
  %v917 = vor.u32 1.1754944e-38, %v916
  %v918 = vsel %vm915, %v917, %v913
  %v919 = vmul.f32 1.0, %v918
  %v920 = vrcp.pop %v689
  %v921 = vmul.f32 %v689, %v920
  %v922 = vsub.f32 1.0, %v921
  %v923 = vmul.f32 %v920, %v922
  %v924 = vadd.f32 %v920, %v923
  %vm925 = vweird.f32 %v689
  %vm926 = vweird.f32 %v920
  %vm927 = vmor %vm925, %vm926
  %v928 = vsel %vm927, %v920, %v924
  %v929 = vand.u32 2147483647, %v689
  %vm930 = vcmp.eq.f32.partialorder %v929, 8.507059e+37
  %v931 = vand.u32 %v689, 2147483648
  %v932 = vor.u32 1.1754944e-38, %v931
  %v933 = vsel %vm930, %v932, %v928
  %v934 = vmul.f32 1.0, %v933
  %v935 = vrcp.pop %v690
  %v936 = vmul.f32 %v690, %v935
  %v937 = vsub.f32 1.0, %v936
  %v938 = vmul.f32 %v935, %v937
  %v939 = vadd.f32 %v935, %v938
  %vm940 = vweird.f32 %v690
  %vm941 = vweird.f32 %v935
  %vm942 = vmor %vm940, %vm941
  %v943 = vsel %vm942, %v935, %v939
  %v944 = vand.u32 2147483647, %v690
  %vm945 = vcmp.eq.f32.partialorder %v944, 8.507059e+37
  %v946 = vand.u32 %v690, 2147483648
  %v947 = vor.u32 1.1754944e-38, %v946
  %v948 = vsel %vm945, %v947, %v943
  %v949 = vmul.f32 1.0, %v948
  %v950 = vrcp.pop %v691
  %v951 = vmul.f32 %v691, %v950
  %v952 = vsub.f32 1.0, %v951
  %v953 = vmul.f32 %v950, %v952
  %v954 = vadd.f32 %v950, %v953
  %vm955 = vweird.f32 %v691
  %vm956 = vweird.f32 %v950
  %vm957 = vmor %vm955, %vm956
  %v958 = vsel %vm957, %v950, %v954
  %v959 = vand.u32 2147483647, %v691
  %vm960 = vcmp.eq.f32.partialorder %v959, 8.507059e+37
  %v961 = vand.u32 %v691, 2147483648
  %v962 = vor.u32 1.1754944e-38, %v961
  %v963 = vsel %vm960, %v962, %v958
  %v964 = vmul.f32 1.0, %v963
  %v965 = vrcp.pop %v692
  %v966 = vmul.f32 %v692, %v965
  %v967 = vsub.f32 1.0, %v966
  %v968 = vmul.f32 %v965, %v967
  %v969 = vadd.f32 %v965, %v968
  %vm970 = vweird.f32 %v692
  %vm971 = vweird.f32 %v965
  %vm972 = vmor %vm970, %vm971
  %v973 = vsel %vm972, %v965, %v969
  %v974 = vand.u32 2147483647, %v692
  %vm975 = vcmp.eq.f32.partialorder %v974, 8.507059e+37
  %v976 = vand.u32 %v692, 2147483648
  %v977 = vor.u32 1.1754944e-38, %v976
  %v978 = vsel %vm975, %v977, %v973
  %v979 = vmul.f32 1.0, %v978
  %v980 = vrcp.pop %v693
  %v981 = vmul.f32 %v693, %v980
  %v982 = vsub.f32 1.0, %v981
  %v983 = vmul.f32 %v980, %v982
  %v984 = vadd.f32 %v980, %v983
  %vm985 = vweird.f32 %v693
  %vm986 = vweird.f32 %v980
  %vm987 = vmor %vm985, %vm986
  %v988 = vsel %vm987, %v980, %v984
  %v989 = vand.u32 2147483647, %v693
  %vm990 = vcmp.eq.f32.partialorder %v989, 8.507059e+37
  %v991 = vand.u32 %v693, 2147483648
  %v992 = vor.u32 1.1754944e-38, %v991
  %v993 = vsel %vm990, %v992, %v988
  %v994 = vmul.f32 1.0, %v993
  %v995 = vrcp.pop %v694
  %v996 = vmul.f32 %v694, %v995
  %v997 = vsub.f32 1.0, %v996
  %v998 = vmul.f32 %v995, %v997
  %v999 = vadd.f32 %v995, %v998
  %vm1000 = vweird.f32 %v694
  %vm1001 = vweird.f32 %v995
  %vm1002 = vmor %vm1000, %vm1001
  %v1003 = vsel %vm1002, %v995, %v999
  %v1004 = vand.u32 2147483647, %v694
  %vm1005 = vcmp.eq.f32.partialorder %v1004, 8.507059e+37
  %v1006 = vand.u32 %v694, 2147483648
  %v1007 = vor.u32 1.1754944e-38, %v1006
  %v1008 = vsel %vm1005, %v1007, %v1003
  %v1009 = vmul.f32 1.0, %v1008
  %v1010 = vrcp.pop %v695
  %v1011 = vmul.f32 %v695, %v1010
  %v1012 = vsub.f32 1.0, %v1011
  %v1013 = vmul.f32 %v1010, %v1012
  %v1014 = vadd.f32 %v1010, %v1013
  %vm1015 = vweird.f32 %v695
  %vm1016 = vweird.f32 %v1010
  %vm1017 = vmor %vm1015, %vm1016
  %v1018 = vsel %vm1017, %v1010, %v1014
  %v1019 = vand.u32 2147483647, %v695
  %vm1020 = vcmp.eq.f32.partialorder %v1019, 8.507059e+37
  %v1021 = vand.u32 %v695, 2147483648
  %v1022 = vor.u32 1.1754944e-38, %v1021
  %v1023 = vsel %vm1020, %v1022, %v1018
  %v1024 = vmul.f32 1.0, %v1023
  %v1025 = vrcp.pop %v696
  %v1026 = vmul.f32 %v696, %v1025
  %v1027 = vsub.f32 1.0, %v1026
  %v1028 = vmul.f32 %v1025, %v1027
  %v1029 = vadd.f32 %v1025, %v1028
  %vm1030 = vweird.f32 %v696
  %vm1031 = vweird.f32 %v1025
  %vm1032 = vmor %vm1030, %vm1031
  %v1033 = vsel %vm1032, %v1025, %v1029
  %v1034 = vand.u32 2147483647, %v696
  %vm1035 = vcmp.eq.f32.partialorder %v1034, 8.507059e+37
  %v1036 = vand.u32 %v696, 2147483648
  %v1037 = vor.u32 1.1754944e-38, %v1036
  %v1038 = vsel %vm1035, %v1037, %v1033
  %v1039 = vmul.f32 1.0, %v1038
  %v1040 = vrcp.pop %v697
  %v1041 = vmul.f32 %v697, %v1040
  %v1042 = vsub.f32 1.0, %v1041
  %v1043 = vmul.f32 %v1040, %v1042
  %v1044 = vadd.f32 %v1040, %v1043
  %vm1045 = vweird.f32 %v697
  %vm1046 = vweird.f32 %v1040
  %vm1047 = vmor %vm1045, %vm1046
  %v1048 = vsel %vm1047, %v1040, %v1044
  %v1049 = vand.u32 2147483647, %v697
  %vm1050 = vcmp.eq.f32.partialorder %v1049, 8.507059e+37
  %v1051 = vand.u32 %v697, 2147483648
  %v1052 = vor.u32 1.1754944e-38, %v1051
  %v1053 = vsel %vm1050, %v1052, %v1048
  %v1054 = vmul.f32 1.0, %v1053
  %v1055 = vrcp.pop %v698
  %v1056 = vmul.f32 %v698, %v1055
  %v1057 = vsub.f32 1.0, %v1056
  %v1058 = vmul.f32 %v1055, %v1057
  %v1059 = vadd.f32 %v1055, %v1058
  %vm1060 = vweird.f32 %v698
  %vm1061 = vweird.f32 %v1055
  %vm1062 = vmor %vm1060, %vm1061
  %v1063 = vsel %vm1062, %v1055, %v1059
  %v1064 = vand.u32 2147483647, %v698
  %vm1065 = vcmp.eq.f32.partialorder %v1064, 8.507059e+37
  %v1066 = vand.u32 %v698, 2147483648
  %v1067 = vor.u32 1.1754944e-38, %v1066
  %v1068 = vsel %vm1065, %v1067, %v1063
  %v1069 = vmul.f32 1.0, %v1068
  %v1070 = vrcp.pop %v699
  %v1071 = vmul.f32 %v699, %v1070
  %v1072 = vsub.f32 1.0, %v1071
  %v1073 = vmul.f32 %v1070, %v1072
  %v1074 = vadd.f32 %v1070, %v1073
  %vm1075 = vweird.f32 %v699
  %vm1076 = vweird.f32 %v1070
  %vm1077 = vmor %vm1075, %vm1076
  %v1078 = vsel %vm1077, %v1070, %v1074
  %v1079 = vand.u32 2147483647, %v699
  %vm1080 = vcmp.eq.f32.partialorder %v1079, 8.507059e+37
  %v1081 = vand.u32 %v699, 2147483648
  %v1082 = vor.u32 1.1754944e-38, %v1081
  %v1083 = vsel %vm1080, %v1082, %v1078
  %v1084 = vmul.f32 1.0, %v1083
  %v1085 = vrcp.pop %v700
  %v1086 = vmul.f32 %v700, %v1085
  %v1087 = vsub.f32 1.0, %v1086
  %v1088 = vmul.f32 %v1085, %v1087
  %v1089 = vadd.f32 %v1085, %v1088
  %vm1090 = vweird.f32 %v700
  %vm1091 = vweird.f32 %v1085
  %vm1092 = vmor %vm1090, %vm1091
  %v1093 = vsel %vm1092, %v1085, %v1089
  %v1094 = vand.u32 2147483647, %v700
  %vm1095 = vcmp.eq.f32.partialorder %v1094, 8.507059e+37
  %v1096 = vand.u32 %v700, 2147483648
  %v1097 = vor.u32 1.1754944e-38, %v1096
  %v1098 = vsel %vm1095, %v1097, %v1093
  %v1099 = vmul.f32 1.0, %v1098
  %v1100 = vrcp.pop %v701
  %v1101 = vmul.f32 %v701, %v1100
  %v1102 = vsub.f32 1.0, %v1101
  %v1103 = vmul.f32 %v1100, %v1102
  %v1104 = vadd.f32 %v1100, %v1103
  %vm1105 = vweird.f32 %v701
  %vm1106 = vweird.f32 %v1100
  %vm1107 = vmor %vm1105, %vm1106
  %v1108 = vsel %vm1107, %v1100, %v1104
  %v1109 = vand.u32 2147483647, %v701
  %vm1110 = vcmp.eq.f32.partialorder %v1109, 8.507059e+37
  %v1111 = vand.u32 %v701, 2147483648
  %v1112 = vor.u32 1.1754944e-38, %v1111
  %v1113 = vsel %vm1110, %v1112, %v1108
  %v1114 = vmul.f32 1.0, %v1113
  %v1115 = vrcp.pop %v702
  %v1116 = vmul.f32 %v702, %v1115
  %v1117 = vsub.f32 1.0, %v1116
  %v1118 = vmul.f32 %v1115, %v1117
  %v1119 = vadd.f32 %v1115, %v1118
  %vm1120 = vweird.f32 %v702
  %vm1121 = vweird.f32 %v1115
  %vm1122 = vmor %vm1120, %vm1121
  %v1123 = vsel %vm1122, %v1115, %v1119
  %v1124 = vand.u32 2147483647, %v702
  %vm1125 = vcmp.eq.f32.partialorder %v1124, 8.507059e+37
  %v1126 = vand.u32 %v702, 2147483648
  %v1127 = vor.u32 1.1754944e-38, %v1126
  %v1128 = vsel %vm1125, %v1127, %v1123
  %v1129 = vmul.f32 1.0, %v1128
  %v1130 = vrcp.pop %v703
  %v1131 = vmul.f32 %v703, %v1130
  %v1132 = vsub.f32 1.0, %v1131
  %v1133 = vmul.f32 %v1130, %v1132
  %v1134 = vadd.f32 %v1130, %v1133
  %vm1135 = vweird.f32 %v703
  %vm1136 = vweird.f32 %v1130
  %vm1137 = vmor %vm1135, %vm1136
  %v1138 = vsel %vm1137, %v1130, %v1134
  %v1139 = vand.u32 2147483647, %v703
  %vm1140 = vcmp.eq.f32.partialorder %v1139, 8.507059e+37
  %v1141 = vand.u32 %v703, 2147483648
  %v1142 = vor.u32 1.1754944e-38, %v1141
  %v1143 = vsel %vm1140, %v1142, %v1138
  %v1144 = vmul.f32 1.0, %v1143
  %v1145 = vrcp.pop %v704
  %v1146 = vmul.f32 %v704, %v1145
  %v1147 = vsub.f32 1.0, %v1146
  %v1148 = vmul.f32 %v1145, %v1147
  %v1149 = vadd.f32 %v1145, %v1148
  %vm1150 = vweird.f32 %v704
  %vm1151 = vweird.f32 %v1145
  %vm1152 = vmor %vm1150, %vm1151
  %v1153 = vsel %vm1152, %v1145, %v1149
  %v1154 = vand.u32 2147483647, %v704
  %vm1155 = vcmp.eq.f32.partialorder %v1154, 8.507059e+37
  %v1156 = vand.u32 %v704, 2147483648
  %v1157 = vor.u32 1.1754944e-38, %v1156
  %v1158 = vsel %vm1155, %v1157, %v1153
  %v1159 = vmul.f32 1.0, %v1158
  %v1160 = vrcp.pop %v705
  %v1161 = vmul.f32 %v705, %v1160
  %v1162 = vsub.f32 1.0, %v1161
  %v1163 = vmul.f32 %v1160, %v1162
  %v1164 = vadd.f32 %v1160, %v1163
  %vm1165 = vweird.f32 %v705
  %vm1166 = vweird.f32 %v1160
  %vm1167 = vmor %vm1165, %vm1166
  %v1168 = vsel %vm1167, %v1160, %v1164
  %v1169 = vand.u32 2147483647, %v705
  %vm1170 = vcmp.eq.f32.partialorder %v1169, 8.507059e+37
  %v1171 = vand.u32 %v705, 2147483648
  %v1172 = vor.u32 1.1754944e-38, %v1171
  %v1173 = vsel %vm1170, %v1172, %v1168
  %v1174 = vmul.f32 1.0, %v1173
  %v1175 = vrcp.pop %v706
  %v1176 = vmul.f32 %v706, %v1175
  %v1177 = vsub.f32 1.0, %v1176
  %v1178 = vmul.f32 %v1175, %v1177
  %v1179 = vadd.f32 %v1175, %v1178
  %vm1180 = vweird.f32 %v706
  %vm1181 = vweird.f32 %v1175
  %vm1182 = vmor %vm1180, %vm1181
  %v1183 = vsel %vm1182, %v1175, %v1179
  %v1184 = vand.u32 2147483647, %v706
  %vm1185 = vcmp.eq.f32.partialorder %v1184, 8.507059e+37
  %v1186 = vand.u32 %v706, 2147483648
  %v1187 = vor.u32 1.1754944e-38, %v1186
  %v1188 = vsel %vm1185, %v1187, %v1183
  %v1189 = vmul.f32 1.0, %v1188
  %v1190 = vrcp.pop %v707
  %v1191 = vmul.f32 %v707, %v1190
  %v1192 = vsub.f32 1.0, %v1191
  %v1193 = vmul.f32 %v1190, %v1192
  %v1194 = vadd.f32 %v1190, %v1193
  %vm1195 = vweird.f32 %v707
  %vm1196 = vweird.f32 %v1190
  %vm1197 = vmor %vm1195, %vm1196
  %v1198 = vsel %vm1197, %v1190, %v1194
  %v1199 = vand.u32 2147483647, %v707
  %vm1200 = vcmp.eq.f32.partialorder %v1199, 8.507059e+37
  %v1201 = vand.u32 %v707, 2147483648
  %v1202 = vor.u32 1.1754944e-38, %v1201
  %v1203 = vsel %vm1200, %v1202, %v1198
  %v1204 = vmul.f32 1.0, %v1203
  %v1205 = vrcp.pop %v708
  %v1206 = vmul.f32 %v708, %v1205
  %v1207 = vsub.f32 1.0, %v1206
  %v1208 = vmul.f32 %v1205, %v1207
  %v1209 = vadd.f32 %v1205, %v1208
  %vm1210 = vweird.f32 %v708
  %vm1211 = vweird.f32 %v1205
  %vm1212 = vmor %vm1210, %vm1211
  %v1213 = vsel %vm1212, %v1205, %v1209
  %v1214 = vand.u32 2147483647, %v708
  %vm1215 = vcmp.eq.f32.partialorder %v1214, 8.507059e+37
  %v1216 = vand.u32 %v708, 2147483648
  %v1217 = vor.u32 1.1754944e-38, %v1216
  %v1218 = vsel %vm1215, %v1217, %v1213
  %v1219 = vmul.f32 1.0, %v1218
  %v1220 = vrcp.pop %v709
  %v1221 = vmul.f32 %v709, %v1220
  %v1222 = vsub.f32 1.0, %v1221
  %v1223 = vmul.f32 %v1220, %v1222
  %v1224 = vadd.f32 %v1220, %v1223
  %vm1225 = vweird.f32 %v709
  %vm1226 = vweird.f32 %v1220
  %vm1227 = vmor %vm1225, %vm1226
  %v1228 = vsel %vm1227, %v1220, %v1224
  %v1229 = vand.u32 2147483647, %v709
  %vm1230 = vcmp.eq.f32.partialorder %v1229, 8.507059e+37
  %v1231 = vand.u32 %v709, 2147483648
  %v1232 = vor.u32 1.1754944e-38, %v1231
  %v1233 = vsel %vm1230, %v1232, %v1228
  %v1234 = vmul.f32 1.0, %v1233
  %v1235 = vrcp.pop %v710
  %v1236 = vmul.f32 %v710, %v1235
  %v1237 = vsub.f32 1.0, %v1236
  %v1238 = vmul.f32 %v1235, %v1237
  %v1239 = vadd.f32 %v1235, %v1238
  %vm1240 = vweird.f32 %v710
  %vm1241 = vweird.f32 %v1235
  %vm1242 = vmor %vm1240, %vm1241
  %v1243 = vsel %vm1242, %v1235, %v1239
  %v1244 = vand.u32 2147483647, %v710
  %vm1245 = vcmp.eq.f32.partialorder %v1244, 8.507059e+37
  %v1246 = vand.u32 %v710, 2147483648
  %v1247 = vor.u32 1.1754944e-38, %v1246
  %v1248 = vsel %vm1245, %v1247, %v1243
  %v1249 = vmul.f32 1.0, %v1248
  %v1250 = vrcp.pop %v711
  %v1251 = vmul.f32 %v711, %v1250
  %v1252 = vsub.f32 1.0, %v1251
  %v1253 = vmul.f32 %v1250, %v1252
  %v1254 = vadd.f32 %v1250, %v1253
  %vm1255 = vweird.f32 %v711
  %vm1256 = vweird.f32 %v1250
  %vm1257 = vmor %vm1255, %vm1256
  %v1258 = vsel %vm1257, %v1250, %v1254
  %v1259 = vand.u32 2147483647, %v711
  %vm1260 = vcmp.eq.f32.partialorder %v1259, 8.507059e+37
  %v1261 = vand.u32 %v711, 2147483648
  %v1262 = vor.u32 1.1754944e-38, %v1261
  %v1263 = vsel %vm1260, %v1262, %v1258
  %v1264 = vmul.f32 1.0, %v1263
  %v1265 = vrcp.pop %v712
  %v1266 = vmul.f32 %v712, %v1265
  %v1267 = vsub.f32 1.0, %v1266
  %v1268 = vmul.f32 %v1265, %v1267
  %v1269 = vadd.f32 %v1265, %v1268
  %vm1270 = vweird.f32 %v712
  %vm1271 = vweird.f32 %v1265
  %vm1272 = vmor %vm1270, %vm1271
  %v1273 = vsel %vm1272, %v1265, %v1269
  %v1274 = vand.u32 2147483647, %v712
  %vm1275 = vcmp.eq.f32.partialorder %v1274, 8.507059e+37
  %v1276 = vand.u32 %v712, 2147483648
  %v1277 = vor.u32 1.1754944e-38, %v1276
  %v1278 = vsel %vm1275, %v1277, %v1273
  %v1279 = vmul.f32 1.0, %v1278
  %v1280 = vrcp.pop %v713
  %v1281 = vmul.f32 %v713, %v1280
  %v1282 = vsub.f32 1.0, %v1281
  %v1283 = vmul.f32 %v1280, %v1282
  %v1284 = vadd.f32 %v1280, %v1283
  %vm1285 = vweird.f32 %v713
  %vm1286 = vweird.f32 %v1280
  %vm1287 = vmor %vm1285, %vm1286
  %v1288 = vsel %vm1287, %v1280, %v1284
  %v1289 = vand.u32 2147483647, %v713
  %vm1290 = vcmp.eq.f32.partialorder %v1289, 8.507059e+37
  %v1291 = vand.u32 %v713, 2147483648
  %v1292 = vor.u32 1.1754944e-38, %v1291
  %v1293 = vsel %vm1290, %v1292, %v1288
  %v1294 = vmul.f32 1.0, %v1293
  %v1295 = vrcp.pop %v714
  %v1296 = vmul.f32 %v714, %v1295
  %v1297 = vsub.f32 1.0, %v1296
  %v1298 = vmul.f32 %v1295, %v1297
  %v1299 = vadd.f32 %v1295, %v1298
  %vm1300 = vweird.f32 %v714
  %vm1301 = vweird.f32 %v1295
  %vm1302 = vmor %vm1300, %vm1301
  %v1303 = vsel %vm1302, %v1295, %v1299
  %v1304 = vand.u32 2147483647, %v714
  %vm1305 = vcmp.eq.f32.partialorder %v1304, 8.507059e+37
  %v1306 = vand.u32 %v714, 2147483648
  %v1307 = vor.u32 1.1754944e-38, %v1306
  %v1308 = vsel %vm1305, %v1307, %v1303
  %v1309 = vmul.f32 1.0, %v1308
  %v1310 = vrcp.pop %v715
  %v1311 = vmul.f32 %v715, %v1310
  %v1312 = vsub.f32 1.0, %v1311
  %v1313 = vmul.f32 %v1310, %v1312
  %v1314 = vadd.f32 %v1310, %v1313
  %vm1315 = vweird.f32 %v715
  %vm1316 = vweird.f32 %v1310
  %vm1317 = vmor %vm1315, %vm1316
  %v1318 = vsel %vm1317, %v1310, %v1314
  %v1319 = vand.u32 2147483647, %v715
  %vm1320 = vcmp.eq.f32.partialorder %v1319, 8.507059e+37
  %v1321 = vand.u32 %v715, 2147483648
  %v1322 = vor.u32 1.1754944e-38, %v1321
  %v1323 = vsel %vm1320, %v1322, %v1318
  %v1324 = vmul.f32 1.0, %v1323
  %v1325 = vrcp.pop %v716
  %v1326 = vmul.f32 %v716, %v1325
  %v1327 = vsub.f32 1.0, %v1326
  %v1328 = vmul.f32 %v1325, %v1327
  %v1329 = vadd.f32 %v1325, %v1328
  %vm1330 = vweird.f32 %v716
  %vm1331 = vweird.f32 %v1325
  %vm1332 = vmor %vm1330, %vm1331
  %v1333 = vsel %vm1332, %v1325, %v1329
  %v1334 = vand.u32 2147483647, %v716
  %vm1335 = vcmp.eq.f32.partialorder %v1334, 8.507059e+37
  %v1336 = vand.u32 %v716, 2147483648
  %v1337 = vor.u32 1.1754944e-38, %v1336
  %v1338 = vsel %vm1335, %v1337, %v1333
  %v1339 = vmul.f32 1.0, %v1338
  %v1340 = vrcp.pop %v717
  %v1341 = vmul.f32 %v717, %v1340
  %v1342 = vsub.f32 1.0, %v1341
  %v1343 = vmul.f32 %v1340, %v1342
  %v1344 = vadd.f32 %v1340, %v1343
  %vm1345 = vweird.f32 %v717
  %vm1346 = vweird.f32 %v1340
  %vm1347 = vmor %vm1345, %vm1346
  %v1348 = vsel %vm1347, %v1340, %v1344
  %v1349 = vand.u32 2147483647, %v717
  %vm1350 = vcmp.eq.f32.partialorder %v1349, 8.507059e+37
  %v1351 = vand.u32 %v717, 2147483648
  %v1352 = vor.u32 1.1754944e-38, %v1351
  %v1353 = vsel %vm1350, %v1352, %v1348
  %v1354 = vmul.f32 1.0, %v1353
  %v1355 = vrcp.pop %v718
  %v1356 = vmul.f32 %v718, %v1355
  %v1357 = vsub.f32 1.0, %v1356
  %v1358 = vmul.f32 %v1355, %v1357
  %v1359 = vadd.f32 %v1355, %v1358
  %vm1360 = vweird.f32 %v718
  %vm1361 = vweird.f32 %v1355
  %vm1362 = vmor %vm1360, %vm1361
  %v1363 = vsel %vm1362, %v1355, %v1359
  %v1364 = vand.u32 2147483647, %v718
  %vm1365 = vcmp.eq.f32.partialorder %v1364, 8.507059e+37
  %v1366 = vand.u32 %v718, 2147483648
  %v1367 = vor.u32 1.1754944e-38, %v1366
  %v1368 = vsel %vm1365, %v1367, %v1363
  %v1369 = vmul.f32 1.0, %v1368
  %v1370 = vrcp.pop %v719
  %v1371 = vmul.f32 %v719, %v1370
  %v1372 = vsub.f32 1.0, %v1371
  %v1373 = vmul.f32 %v1370, %v1372
  %v1374 = vadd.f32 %v1370, %v1373
  %vm1375 = vweird.f32 %v719
  %vm1376 = vweird.f32 %v1370
  %vm1377 = vmor %vm1375, %vm1376
  %v1378 = vsel %vm1377, %v1370, %v1374
  %v1379 = vand.u32 2147483647, %v719
  %vm1380 = vcmp.eq.f32.partialorder %v1379, 8.507059e+37
  %v1381 = vand.u32 %v719, 2147483648
  %v1382 = vor.u32 1.1754944e-38, %v1381
  %v1383 = vsel %vm1380, %v1382, %v1378
  %v1384 = vmul.f32 1.0, %v1383
  %v1385 = vrcp.pop %v720
  %v1386 = vmul.f32 %v720, %v1385
  %v1387 = vsub.f32 1.0, %v1386
  %v1388 = vmul.f32 %v1385, %v1387
  %v1389 = vadd.f32 %v1385, %v1388
  %vm1390 = vweird.f32 %v720
  %vm1391 = vweird.f32 %v1385
  %vm1392 = vmor %vm1390, %vm1391
  %v1393 = vsel %vm1392, %v1385, %v1389
  %v1394 = vand.u32 2147483647, %v720
  %vm1395 = vcmp.eq.f32.partialorder %v1394, 8.507059e+37
  %v1396 = vand.u32 %v720, 2147483648
  %v1397 = vor.u32 1.1754944e-38, %v1396
  %v1398 = vsel %vm1395, %v1397, %v1393
  %v1399 = vmul.f32 1.0, %v1398
  %v1400 = vrcp.pop %v721
  %v1401 = vmul.f32 %v721, %v1400
  %v1402 = vsub.f32 1.0, %v1401
  %v1403 = vmul.f32 %v1400, %v1402
  %v1404 = vadd.f32 %v1400, %v1403
  %vm1405 = vweird.f32 %v721
  %vm1406 = vweird.f32 %v1400
  %vm1407 = vmor %vm1405, %vm1406
  %v1408 = vsel %vm1407, %v1400, %v1404
  %v1409 = vand.u32 2147483647, %v721
  %vm1410 = vcmp.eq.f32.partialorder %v1409, 8.507059e+37
  %v1411 = vand.u32 %v721, 2147483648
  %v1412 = vor.u32 1.1754944e-38, %v1411
  %v1413 = vsel %vm1410, %v1412, %v1408
  %v1414 = vmul.f32 1.0, %v1413
  %v1415 = vrcp.pop %v722
  %v1416 = vmul.f32 %v722, %v1415
  %v1417 = vsub.f32 1.0, %v1416
  %v1418 = vmul.f32 %v1415, %v1417
  %v1419 = vadd.f32 %v1415, %v1418
  %vm1420 = vweird.f32 %v722
  %vm1421 = vweird.f32 %v1415
  %vm1422 = vmor %vm1420, %vm1421
  %v1423 = vsel %vm1422, %v1415, %v1419
  %v1424 = vand.u32 2147483647, %v722
  %vm1425 = vcmp.eq.f32.partialorder %v1424, 8.507059e+37
  %v1426 = vand.u32 %v722, 2147483648
  %v1427 = vor.u32 1.1754944e-38, %v1426
  %v1428 = vsel %vm1425, %v1427, %v1423
  %v1429 = vmul.f32 1.0, %v1428
  %v1430 = vrcp.pop %v723
  %v1431 = vmul.f32 %v723, %v1430
  %v1432 = vsub.f32 1.0, %v1431
  %v1433 = vmul.f32 %v1430, %v1432
  %v1434 = vadd.f32 %v1430, %v1433
  %vm1435 = vweird.f32 %v723
  %vm1436 = vweird.f32 %v1430
  %vm1437 = vmor %vm1435, %vm1436
  %v1438 = vsel %vm1437, %v1430, %v1434
  %v1439 = vand.u32 2147483647, %v723
  %vm1440 = vcmp.eq.f32.partialorder %v1439, 8.507059e+37
  %v1441 = vand.u32 %v723, 2147483648
  %v1442 = vor.u32 1.1754944e-38, %v1441
  %v1443 = vsel %vm1440, %v1442, %v1438
  %v1444 = vmul.f32 1.0, %v1443
  %v1445 = vrcp.pop %v724
  %v1446 = vmul.f32 %v724, %v1445
  %v1447 = vsub.f32 1.0, %v1446
  %v1448 = vmul.f32 %v1445, %v1447
  %v1449 = vadd.f32 %v1445, %v1448
  %vm1450 = vweird.f32 %v724
  %vm1451 = vweird.f32 %v1445
  %vm1452 = vmor %vm1450, %vm1451
  %v1453 = vsel %vm1452, %v1445, %v1449
  %v1454 = vand.u32 2147483647, %v724
  %vm1455 = vcmp.eq.f32.partialorder %v1454, 8.507059e+37
  %v1456 = vand.u32 %v724, 2147483648
  %v1457 = vor.u32 1.1754944e-38, %v1456
  %v1458 = vsel %vm1455, %v1457, %v1453
  %v1459 = vmul.f32 1.0, %v1458
  %v1460 = vrcp.pop %v725
  %v1461 = vmul.f32 %v725, %v1460
  %v1462 = vsub.f32 1.0, %v1461
  %v1463 = vmul.f32 %v1460, %v1462
  %v1464 = vadd.f32 %v1460, %v1463
  %vm1465 = vweird.f32 %v725
  %vm1466 = vweird.f32 %v1460
  %vm1467 = vmor %vm1465, %vm1466
  %v1468 = vsel %vm1467, %v1460, %v1464
  %v1469 = vand.u32 2147483647, %v725
  %vm1470 = vcmp.eq.f32.partialorder %v1469, 8.507059e+37
  %v1471 = vand.u32 %v725, 2147483648
  %v1472 = vor.u32 1.1754944e-38, %v1471
  %v1473 = vsel %vm1470, %v1472, %v1468
  %v1474 = vmul.f32 1.0, %v1473
  %v1475 = vrcp.pop %v726
  %v1476 = vmul.f32 %v726, %v1475
  %v1477 = vsub.f32 1.0, %v1476
  %v1478 = vmul.f32 %v1475, %v1477
  %v1479 = vadd.f32 %v1475, %v1478
  %vm1480 = vweird.f32 %v726
  %vm1481 = vweird.f32 %v1475
  %vm1482 = vmor %vm1480, %vm1481
  %v1483 = vsel %vm1482, %v1475, %v1479
  %v1484 = vand.u32 2147483647, %v726
  %vm1485 = vcmp.eq.f32.partialorder %v1484, 8.507059e+37
  %v1486 = vand.u32 %v726, 2147483648
  %v1487 = vor.u32 1.1754944e-38, %v1486
  %v1488 = vsel %vm1485, %v1487, %v1483
  %v1489 = vmul.f32 1.0, %v1488
  %v1490 = vrcp.pop %v727
  %v1491 = vmul.f32 %v727, %v1490
  %v1492 = vsub.f32 1.0, %v1491
  %v1493 = vmul.f32 %v1490, %v1492
  %v1494 = vadd.f32 %v1490, %v1493
  %vm1495 = vweird.f32 %v727
  %vm1496 = vweird.f32 %v1490
  %vm1497 = vmor %vm1495, %vm1496
  %v1498 = vsel %vm1497, %v1490, %v1494
  %v1499 = vand.u32 2147483647, %v727
  %vm1500 = vcmp.eq.f32.partialorder %v1499, 8.507059e+37
  %v1501 = vand.u32 %v727, 2147483648
  %v1502 = vor.u32 1.1754944e-38, %v1501
  %v1503 = vsel %vm1500, %v1502, %v1498
  %v1504 = vmul.f32 1.0, %v1503
  %v1505 = vrcp.pop %v728
  %v1506 = vmul.f32 %v728, %v1505
  %v1507 = vsub.f32 1.0, %v1506
  %v1508 = vmul.f32 %v1505, %v1507
  %v1509 = vadd.f32 %v1505, %v1508
  %vm1510 = vweird.f32 %v728
  %vm1511 = vweird.f32 %v1505
  %vm1512 = vmor %vm1510, %vm1511
  %v1513 = vsel %vm1512, %v1505, %v1509
  %v1514 = vand.u32 2147483647, %v728
  %vm1515 = vcmp.eq.f32.partialorder %v1514, 8.507059e+37
  %v1516 = vand.u32 %v728, 2147483648
  %v1517 = vor.u32 1.1754944e-38, %v1516
  %v1518 = vsel %vm1515, %v1517, %v1513
  %v1519 = vmul.f32 1.0, %v1518
  %v1520 = vrcp.pop %v729
  %v1521 = vmul.f32 %v729, %v1520
  %v1522 = vsub.f32 1.0, %v1521
  %v1523 = vmul.f32 %v1520, %v1522
  %v1524 = vadd.f32 %v1520, %v1523
  %vm1525 = vweird.f32 %v729
  %vm1526 = vweird.f32 %v1520
  %vm1527 = vmor %vm1525, %vm1526
  %v1528 = vsel %vm1527, %v1520, %v1524
  %v1529 = vand.u32 2147483647, %v729
  %vm1530 = vcmp.eq.f32.partialorder %v1529, 8.507059e+37
  %v1531 = vand.u32 %v729, 2147483648
  %v1532 = vor.u32 1.1754944e-38, %v1531
  %v1533 = vsel %vm1530, %v1532, %v1528
  %v1534 = vmul.f32 1.0, %v1533
  %v1535 = vrcp.pop %v730
  %v1536 = vmul.f32 %v730, %v1535
  %v1537 = vsub.f32 1.0, %v1536
  %v1538 = vmul.f32 %v1535, %v1537
  %v1539 = vadd.f32 %v1535, %v1538
  %vm1540 = vweird.f32 %v730
  %vm1541 = vweird.f32 %v1535
  %vm1542 = vmor %vm1540, %vm1541
  %v1543 = vsel %vm1542, %v1535, %v1539
  %v1544 = vand.u32 2147483647, %v730
  %vm1545 = vcmp.eq.f32.partialorder %v1544, 8.507059e+37
  %v1546 = vand.u32 %v730, 2147483648
  %v1547 = vor.u32 1.1754944e-38, %v1546
  %v1548 = vsel %vm1545, %v1547, %v1543
  %v1549 = vmul.f32 1.0, %v1548
  %v1550 = vrcp.pop %v731
  %v1551 = vmul.f32 %v731, %v1550
  %v1552 = vsub.f32 1.0, %v1551
  %v1553 = vmul.f32 %v1550, %v1552
  %v1554 = vadd.f32 %v1550, %v1553
  %vm1555 = vweird.f32 %v731
  %vm1556 = vweird.f32 %v1550
  %vm1557 = vmor %vm1555, %vm1556
  %v1558 = vsel %vm1557, %v1550, %v1554
  %v1559 = vand.u32 2147483647, %v731
  %vm1560 = vcmp.eq.f32.partialorder %v1559, 8.507059e+37
  %v1561 = vand.u32 %v731, 2147483648
  %v1562 = vor.u32 1.1754944e-38, %v1561
  %v1563 = vsel %vm1560, %v1562, %v1558
  %v1564 = vmul.f32 1.0, %v1563
  %v1565 = vrcp.pop %v732
  %v1566 = vmul.f32 %v732, %v1565
  %v1567 = vsub.f32 1.0, %v1566
  %v1568 = vmul.f32 %v1565, %v1567
  %v1569 = vadd.f32 %v1565, %v1568
  %vm1570 = vweird.f32 %v732
  %vm1571 = vweird.f32 %v1565
  %vm1572 = vmor %vm1570, %vm1571
  %v1573 = vsel %vm1572, %v1565, %v1569
  %v1574 = vand.u32 2147483647, %v732
  %vm1575 = vcmp.eq.f32.partialorder %v1574, 8.507059e+37
  %v1576 = vand.u32 %v732, 2147483648
  %v1577 = vor.u32 1.1754944e-38, %v1576
  %v1578 = vsel %vm1575, %v1577, %v1573
  %v1579 = vmul.f32 1.0, %v1578
  %v1580 = vrcp.pop %v733
  %v1581 = vmul.f32 %v733, %v1580
  %v1582 = vsub.f32 1.0, %v1581
  %v1583 = vmul.f32 %v1580, %v1582
  %v1584 = vadd.f32 %v1580, %v1583
  %vm1585 = vweird.f32 %v733
  %vm1586 = vweird.f32 %v1580
  %vm1587 = vmor %vm1585, %vm1586
  %v1588 = vsel %vm1587, %v1580, %v1584
  %v1589 = vand.u32 2147483647, %v733
  %vm1590 = vcmp.eq.f32.partialorder %v1589, 8.507059e+37
  %v1591 = vand.u32 %v733, 2147483648
  %v1592 = vor.u32 1.1754944e-38, %v1591
  %v1593 = vsel %vm1590, %v1592, %v1588
  %v1594 = vmul.f32 1.0, %v1593
  %v1595 = vrcp.pop %v734
  %v1596 = vmul.f32 %v734, %v1595
  %v1597 = vsub.f32 1.0, %v1596
  %v1598 = vmul.f32 %v1595, %v1597
  %v1599 = vadd.f32 %v1595, %v1598
  %vm1600 = vweird.f32 %v734
  %vm1601 = vweird.f32 %v1595
  %vm1602 = vmor %vm1600, %vm1601
  %v1603 = vsel %vm1602, %v1595, %v1599
  %v1604 = vand.u32 2147483647, %v734
  %vm1605 = vcmp.eq.f32.partialorder %v1604, 8.507059e+37
  %v1606 = vand.u32 %v734, 2147483648
  %v1607 = vor.u32 1.1754944e-38, %v1606
  %v1608 = vsel %vm1605, %v1607, %v1603
  %v1609 = vmul.f32 1.0, %v1608
  %v1610 = vrcp.pop %v735
  %v1611 = vmul.f32 %v735, %v1610
  %v1612 = vsub.f32 1.0, %v1611
  %v1613 = vmul.f32 %v1610, %v1612
  %v1614 = vadd.f32 %v1610, %v1613
  %vm1615 = vweird.f32 %v735
  %vm1616 = vweird.f32 %v1610
  %vm1617 = vmor %vm1615, %vm1616
  %v1618 = vsel %vm1617, %v1610, %v1614
  %v1619 = vand.u32 2147483647, %v735
  %vm1620 = vcmp.eq.f32.partialorder %v1619, 8.507059e+37
  %v1621 = vand.u32 %v735, 2147483648
  %v1622 = vor.u32 1.1754944e-38, %v1621
  %v1623 = vsel %vm1620, %v1622, %v1618
  %v1624 = vmul.f32 1.0, %v1623
  %v1625 = vrcp.pop %v736
  %v1626 = vmul.f32 %v736, %v1625
  %v1627 = vsub.f32 1.0, %v1626
  %v1628 = vmul.f32 %v1625, %v1627
  %v1629 = vadd.f32 %v1625, %v1628
  %vm1630 = vweird.f32 %v736
  %vm1631 = vweird.f32 %v1625
  %vm1632 = vmor %vm1630, %vm1631
  %v1633 = vsel %vm1632, %v1625, %v1629
  %v1634 = vand.u32 2147483647, %v736
  %vm1635 = vcmp.eq.f32.partialorder %v1634, 8.507059e+37
  %v1636 = vand.u32 %v736, 2147483648
  %v1637 = vor.u32 1.1754944e-38, %v1636
  %v1638 = vsel %vm1635, %v1637, %v1633
  %v1639 = vmul.f32 1.0, %v1638
  %v1640 = vrcp.pop %v737
  %v1641 = vmul.f32 %v737, %v1640
  %v1642 = vsub.f32 1.0, %v1641
  %v1643 = vmul.f32 %v1640, %v1642
  %v1644 = vadd.f32 %v1640, %v1643
  %vm1645 = vweird.f32 %v737
  %vm1646 = vweird.f32 %v1640
  %vm1647 = vmor %vm1645, %vm1646
  %v1648 = vsel %vm1647, %v1640, %v1644
  %v1649 = vand.u32 2147483647, %v737
  %vm1650 = vcmp.eq.f32.partialorder %v1649, 8.507059e+37
  %v1651 = vand.u32 %v737, 2147483648
  %v1652 = vor.u32 1.1754944e-38, %v1651
  %v1653 = vsel %vm1650, %v1652, %v1648
  %v1654 = vmul.f32 1.0, %v1653
  %v1655 = vrcp.pop %v738
  %v1656 = vmul.f32 %v738, %v1655
  %v1657 = vsub.f32 1.0, %v1656
  %v1658 = vmul.f32 %v1655, %v1657
  %v1659 = vadd.f32 %v1655, %v1658
  %vm1660 = vweird.f32 %v738
  %vm1661 = vweird.f32 %v1655
  %vm1662 = vmor %vm1660, %vm1661
  %v1663 = vsel %vm1662, %v1655, %v1659
  %v1664 = vand.u32 2147483647, %v738
  %vm1665 = vcmp.eq.f32.partialorder %v1664, 8.507059e+37
  %v1666 = vand.u32 %v738, 2147483648
  %v1667 = vor.u32 1.1754944e-38, %v1666
  %v1668 = vsel %vm1665, %v1667, %v1663
  %v1669 = vmul.f32 1.0, %v1668
  %v1670 = vrcp.pop %v739
  %v1671 = vmul.f32 %v739, %v1670
  %v1672 = vsub.f32 1.0, %v1671
  %v1673 = vmul.f32 %v1670, %v1672
  %v1674 = vadd.f32 %v1670, %v1673
  %vm1675 = vweird.f32 %v739
  %vm1676 = vweird.f32 %v1670
  %vm1677 = vmor %vm1675, %vm1676
  %v1678 = vsel %vm1677, %v1670, %v1674
  %v1679 = vand.u32 2147483647, %v739
  %vm1680 = vcmp.eq.f32.partialorder %v1679, 8.507059e+37
  %v1681 = vand.u32 %v739, 2147483648
  %v1682 = vor.u32 1.1754944e-38, %v1681
  %v1683 = vsel %vm1680, %v1682, %v1678
  %v1684 = vmul.f32 1.0, %v1683
  %v1685 = vld [vmem:[%s3] sm:$0xff]
  %v1686 = vld [vmem:[%s3 + $0x8] sm:$0xff]
  %v1687 = vld [vmem:[%s3 + $0x10] sm:$0xff]
  %v1688 = vld [vmem:[%s3 + $0x18] sm:$0xff]
  %v1689 = vld [vmem:[%s4] sm:$0x1]
  %v1691 = vperm.slane %v1689, 0
  %vm1693 = vcmask 261120
  %v1695 = vsel %vm1693, %v754, 0
  %v1698 = vsel %vm1693, %v769, 0
  %v1701 = vsel %vm1693, %v784, 0
  %v1704 = vsel %vm1693, %v799, 0
  %v1707 = vsel %vm1693, %v814, 0
  %v1710 = vsel %vm1693, %v829, 0
  %v1713 = vsel %vm1693, %v844, 0
  %v1716 = vsel %vm1693, %v859, 0
  %v1719 = vsel %vm1693, %v874, 0
  %v1722 = vsel %vm1693, %v889, 0
  %v1725 = vsel %vm1693, %v904, 0
  %v1728 = vsel %vm1693, %v919, 0
  %v1731 = vsel %vm1693, %v934, 0
  %v1734 = vsel %vm1693, %v949, 0
  %v1737 = vsel %vm1693, %v964, 0
  %v1740 = vsel %vm1693, %v979, 0
  %v1743 = vsel %vm1693, %v994, 0
  %v1746 = vsel %vm1693, %v1009, 0
  %v1749 = vsel %vm1693, %v1024, 0
  %v1752 = vsel %vm1693, %v1039, 0
  %v1755 = vsel %vm1693, %v1054, 0
  %v1758 = vsel %vm1693, %v1069, 0
  %v1761 = vsel %vm1693, %v1084, 0
  %v1764 = vsel %vm1693, %v1099, 0
  %v1767 = vsel %vm1693, %v1114, 0
  %v1770 = vsel %vm1693, %v1129, 0
  %v1773 = vsel %vm1693, %v1144, 0
  %v1776 = vsel %vm1693, %v1159, 0
  %v1779 = vsel %vm1693, %v1174, 0
  %v1782 = vsel %vm1693, %v1189, 0
  %v1785 = vsel %vm1693, %v1204, 0
  %v1788 = vsel %vm1693, %v1219, 0
  %v1791 = vsel %vm1693, %v1234, 0
  %v1794 = vsel %vm1693, %v1249, 0
  %v1797 = vsel %vm1693, %v1264, 0
  %v1800 = vsel %vm1693, %v1279, 0
  %v1803 = vsel %vm1693, %v1294, 0
  %v1806 = vsel %vm1693, %v1309, 0
  %v1809 = vsel %vm1693, %v1324, 0
  %v1812 = vsel %vm1693, %v1339, 0
  %v1815 = vsel %vm1693, %v1354, 0
  %v1818 = vsel %vm1693, %v1369, 0
  %v1821 = vsel %vm1693, %v1384, 0
  %v1824 = vsel %vm1693, %v1399, 0
  %v1827 = vsel %vm1693, %v1414, 0
  %v1830 = vsel %vm1693, %v1429, 0
  %v1833 = vsel %vm1693, %v1444, 0
  %v1836 = vsel %vm1693, %v1459, 0
  %v1839 = vsel %vm1693, %v1474, 0
  %v1842 = vsel %vm1693, %v1489, 0
  %v1845 = vsel %vm1693, %v1504, 0
  %v1848 = vsel %vm1693, %v1519, 0
  %v1851 = vsel %vm1693, %v1534, 0
  %v1854 = vsel %vm1693, %v1549, 0
  %v1857 = vsel %vm1693, %v1564, 0
  %v1860 = vsel %vm1693, %v1579, 0
  %v1863 = vsel %vm1693, %v1594, 0
  %v1866 = vsel %vm1693, %v1609, 0
  %v1869 = vsel %vm1693, %v1624, 0
  %v1872 = vsel %vm1693, %v1639, 0
  %v1875 = vsel %vm1693, %v1654, 0
  %v1878 = vsel %vm1693, %v1669, 0
  %v1881 = vsel %vm1693, %v1684, 0
  %1883 = vmatpush.msra.mxu0 0.0
  %1884 = vmatpush.msra.mxu0 0.0
  %1885 = vmatpush.msra.mxu0 0.0
  %1886 = vmatpush.msra.mxu0 0.0
  %1887 = vmatpush.msra.mxu0 0.0
  %1888 = vmatpush.msra.mxu0 0.0
  %1889 = vmatpush.msra.mxu0 0.0
  %1890 = vmatpush.msra.mxu0 0.0
  %1891 = vmatpush.msra.mxu0 0.0
  %1892 = vmatpush.msra.mxu0 0.0
  %1893 = vmatpush.msra.mxu0 0.0
  %1894 = vmatpush.msra.mxu0 0.0
  %1895 = vmatpush.msra.mxu0 %v1688
  %1896 = vmatpush.msra.mxu0 %v1687
  %1897 = vmatpush.msra.mxu0 %v1686
  %1898 = vmatpush.msra.mxu0 %v1685
  %1899 = vmatmul.f32.gmra.mxu0 %v1695
  %v1900 = vpop.f32.mrf.mxu0
  %v1901 = vadd.f32 %v1691, %v1900
  %1902 = vmatmul.f32.gmra.mxu0 %v1698
  %v1903 = vpop.f32.mrf.mxu0
  %v1904 = vadd.f32 %v1691, %v1903
  %1905 = vmatmul.f32.gmra.mxu0 %v1701
  %v1906 = vpop.f32.mrf.mxu0
  %v1907 = vadd.f32 %v1691, %v1906
  %1908 = vmatmul.f32.gmra.mxu0 %v1704
  %v1909 = vpop.f32.mrf.mxu0
  %v1910 = vadd.f32 %v1691, %v1909
  %1911 = vmatmul.f32.gmra.mxu0 %v1707
  %v1912 = vpop.f32.mrf.mxu0
  %v1913 = vadd.f32 %v1691, %v1912
  %1914 = vmatmul.f32.gmra.mxu0 %v1710
  %v1915 = vpop.f32.mrf.mxu0
  %v1916 = vadd.f32 %v1691, %v1915
  %1917 = vmatmul.f32.gmra.mxu0 %v1713
  %v1918 = vpop.f32.mrf.mxu0
  %v1919 = vadd.f32 %v1691, %v1918
  %1920 = vmatmul.f32.gmra.mxu0 %v1716
  %v1921 = vpop.f32.mrf.mxu0
  %v1922 = vadd.f32 %v1691, %v1921
  %1923 = vmatmul.f32.gmra.mxu0 %v1719
  %v1924 = vpop.f32.mrf.mxu0
  %v1925 = vadd.f32 %v1691, %v1924
  %1926 = vmatmul.f32.gmra.mxu0 %v1722
  %v1927 = vpop.f32.mrf.mxu0
  %v1928 = vadd.f32 %v1691, %v1927
  %1929 = vmatmul.f32.gmra.mxu0 %v1725
  %v1930 = vpop.f32.mrf.mxu0
  %v1931 = vadd.f32 %v1691, %v1930
  %1932 = vmatmul.f32.gmra.mxu0 %v1728
  %v1933 = vpop.f32.mrf.mxu0
  %v1934 = vadd.f32 %v1691, %v1933
  %1935 = vmatmul.f32.gmra.mxu0 %v1731
  %v1936 = vpop.f32.mrf.mxu0
  %v1937 = vadd.f32 %v1691, %v1936
  %1938 = vmatmul.f32.gmra.mxu0 %v1734
  %v1939 = vpop.f32.mrf.mxu0
  %v1940 = vadd.f32 %v1691, %v1939
  %1941 = vmatmul.f32.gmra.mxu0 %v1737
  %v1942 = vpop.f32.mrf.mxu0
  %v1943 = vadd.f32 %v1691, %v1942
  %1944 = vmatmul.f32.gmra.mxu0 %v1740
  %v1945 = vpop.f32.mrf.mxu0
  %v1946 = vadd.f32 %v1691, %v1945
  %1947 = vmatmul.f32.gmra.mxu0 %v1743
  %v1948 = vpop.f32.mrf.mxu0
  %v1949 = vadd.f32 %v1691, %v1948
  %1950 = vmatmul.f32.gmra.mxu0 %v1746
  %v1951 = vpop.f32.mrf.mxu0
  %v1952 = vadd.f32 %v1691, %v1951
  %1953 = vmatmul.f32.gmra.mxu0 %v1749
  %v1954 = vpop.f32.mrf.mxu0
  %v1955 = vadd.f32 %v1691, %v1954
  %1956 = vmatmul.f32.gmra.mxu0 %v1752
  %v1957 = vpop.f32.mrf.mxu0
  %v1958 = vadd.f32 %v1691, %v1957
  %1959 = vmatmul.f32.gmra.mxu0 %v1755
  %v1960 = vpop.f32.mrf.mxu0
  %v1961 = vadd.f32 %v1691, %v1960
  %1962 = vmatmul.f32.gmra.mxu0 %v1758
  %v1963 = vpop.f32.mrf.mxu0
  %v1964 = vadd.f32 %v1691, %v1963
  %1965 = vmatmul.f32.gmra.mxu0 %v1761
  %v1966 = vpop.f32.mrf.mxu0
  %v1967 = vadd.f32 %v1691, %v1966
  %1968 = vmatmul.f32.gmra.mxu0 %v1764
  %v1969 = vpop.f32.mrf.mxu0
  %v1970 = vadd.f32 %v1691, %v1969
  %1971 = vmatmul.f32.gmra.mxu0 %v1767
  %v1972 = vpop.f32.mrf.mxu0
  %v1973 = vadd.f32 %v1691, %v1972
  %1974 = vmatmul.f32.gmra.mxu0 %v1770
  %v1975 = vpop.f32.mrf.mxu0
  %v1976 = vadd.f32 %v1691, %v1975
  %1977 = vmatmul.f32.gmra.mxu0 %v1773
  %v1978 = vpop.f32.mrf.mxu0
  %v1979 = vadd.f32 %v1691, %v1978
  %1980 = vmatmul.f32.gmra.mxu0 %v1776
  %v1981 = vpop.f32.mrf.mxu0
  %v1982 = vadd.f32 %v1691, %v1981
  %1983 = vmatmul.f32.gmra.mxu0 %v1779
  %v1984 = vpop.f32.mrf.mxu0
  %v1985 = vadd.f32 %v1691, %v1984
  %1986 = vmatmul.f32.gmra.mxu0 %v1782
  %v1987 = vpop.f32.mrf.mxu0
  %v1988 = vadd.f32 %v1691, %v1987
  %1989 = vmatmul.f32.gmra.mxu0 %v1785
  %v1990 = vpop.f32.mrf.mxu0
  %v1991 = vadd.f32 %v1691, %v1990
  %1992 = vmatmul.f32.gmra.mxu0 %v1788
  %v1993 = vpop.f32.mrf.mxu0
  %v1994 = vadd.f32 %v1691, %v1993
  %1995 = vmatmul.f32.gmra.mxu0 %v1791
  %v1996 = vpop.f32.mrf.mxu0
  %v1997 = vadd.f32 %v1691, %v1996
  %1998 = vmatmul.f32.gmra.mxu0 %v1794
  %v1999 = vpop.f32.mrf.mxu0
  %v2000 = vadd.f32 %v1691, %v1999
  %2001 = vmatmul.f32.gmra.mxu0 %v1797
  %v2002 = vpop.f32.mrf.mxu0
  %v2003 = vadd.f32 %v1691, %v2002
  %2004 = vmatmul.f32.gmra.mxu0 %v1800
  %v2005 = vpop.f32.mrf.mxu0
  %v2006 = vadd.f32 %v1691, %v2005
  %2007 = vmatmul.f32.gmra.mxu0 %v1803
  %v2008 = vpop.f32.mrf.mxu0
  %v2009 = vadd.f32 %v1691, %v2008
  %2010 = vmatmul.f32.gmra.mxu0 %v1806
  %v2011 = vpop.f32.mrf.mxu0
  %v2012 = vadd.f32 %v1691, %v2011
  %2013 = vmatmul.f32.gmra.mxu0 %v1809
  %v2014 = vpop.f32.mrf.mxu0
  %v2015 = vadd.f32 %v1691, %v2014
  %2016 = vmatmul.f32.gmra.mxu0 %v1812
  %v2017 = vpop.f32.mrf.mxu0
  %v2018 = vadd.f32 %v1691, %v2017
  %2019 = vmatmul.f32.gmra.mxu0 %v1815
  %v2020 = vpop.f32.mrf.mxu0
  %v2021 = vadd.f32 %v1691, %v2020
  %2022 = vmatmul.f32.gmra.mxu0 %v1818
  %v2023 = vpop.f32.mrf.mxu0
  %v2024 = vadd.f32 %v1691, %v2023
  %2025 = vmatmul.f32.gmra.mxu0 %v1821
  %v2026 = vpop.f32.mrf.mxu0
  %v2027 = vadd.f32 %v1691, %v2026
  %2028 = vmatmul.f32.gmra.mxu0 %v1824
  %v2029 = vpop.f32.mrf.mxu0
  %v2030 = vadd.f32 %v1691, %v2029
  %2031 = vmatmul.f32.gmra.mxu0 %v1827
  %v2032 = vpop.f32.mrf.mxu0
  %v2033 = vadd.f32 %v1691, %v2032
  %2034 = vmatmul.f32.gmra.mxu0 %v1830
  %v2035 = vpop.f32.mrf.mxu0
  %v2036 = vadd.f32 %v1691, %v2035
  %2037 = vmatmul.f32.gmra.mxu0 %v1833
  %v2038 = vpop.f32.mrf.mxu0
  %v2039 = vadd.f32 %v1691, %v2038
  %2040 = vmatmul.f32.gmra.mxu0 %v1836
  %v2041 = vpop.f32.mrf.mxu0
  %v2042 = vadd.f32 %v1691, %v2041
  %2043 = vmatmul.f32.gmra.mxu0 %v1839
  %v2044 = vpop.f32.mrf.mxu0
  %v2045 = vadd.f32 %v1691, %v2044
  %2046 = vmatmul.f32.gmra.mxu0 %v1842
  %v2047 = vpop.f32.mrf.mxu0
  %v2048 = vadd.f32 %v1691, %v2047
  %2049 = vmatmul.f32.gmra.mxu0 %v1845
  %v2050 = vpop.f32.mrf.mxu0
  %v2051 = vadd.f32 %v1691, %v2050
  %2052 = vmatmul.f32.gmra.mxu0 %v1848
  %v2053 = vpop.f32.mrf.mxu0
  %v2054 = vadd.f32 %v1691, %v2053
  %2055 = vmatmul.f32.gmra.mxu0 %v1851
  %v2056 = vpop.f32.mrf.mxu0
  %v2057 = vadd.f32 %v1691, %v2056
  %2058 = vmatmul.f32.gmra.mxu0 %v1854
  %v2059 = vpop.f32.mrf.mxu0
  %v2060 = vadd.f32 %v1691, %v2059
  %2061 = vmatmul.f32.gmra.mxu0 %v1857
  %v2062 = vpop.f32.mrf.mxu0
  %v2063 = vadd.f32 %v1691, %v2062
  %2064 = vmatmul.f32.gmra.mxu0 %v1860
  %v2065 = vpop.f32.mrf.mxu0
  %v2066 = vadd.f32 %v1691, %v2065
  %2067 = vmatmul.f32.gmra.mxu0 %v1863
  %v2068 = vpop.f32.mrf.mxu0
  %v2069 = vadd.f32 %v1691, %v2068
  %2070 = vmatmul.f32.gmra.mxu0 %v1866
  %v2071 = vpop.f32.mrf.mxu0
  %v2072 = vadd.f32 %v1691, %v2071
  %2073 = vmatmul.f32.gmra.mxu0 %v1869
  %v2074 = vpop.f32.mrf.mxu0
  %v2075 = vadd.f32 %v1691, %v2074
  %2076 = vmatmul.f32.gmra.mxu0 %v1872
  %v2077 = vpop.f32.mrf.mxu0
  %v2078 = vadd.f32 %v1691, %v2077
  %2079 = vmatmul.f32.gmra.mxu0 %v1875
  %v2080 = vpop.f32.mrf.mxu0
  %v2081 = vadd.f32 %v1691, %v2080
  %2082 = vmatmul.f32.gmra.mxu0 %v1878
  %v2083 = vpop.f32.mrf.mxu0
  %v2084 = vadd.f32 %v1691, %v2083
  %2085 = vmatmul.f32.gmra.mxu0 %v1881
  %v2086 = vpop.f32.mrf.mxu0
  %v2087 = vadd.f32 %v1691, %v2086
  %2088 = vdwg.mxu0
  %v2089 = vsub.f32 0.0, %v1901
  %v2090 = vsub.f32 0.0, %v1904
  %v2091 = vsub.f32 0.0, %v1907
  %v2092 = vsub.f32 0.0, %v1910
  %v2093 = vsub.f32 0.0, %v1913
  %v2094 = vsub.f32 0.0, %v1916
  %v2095 = vsub.f32 0.0, %v1919
  %v2096 = vsub.f32 0.0, %v1922
  %v2097 = vsub.f32 0.0, %v1925
  %v2098 = vsub.f32 0.0, %v1928
  %v2099 = vsub.f32 0.0, %v1931
  %v2100 = vsub.f32 0.0, %v1934
  %v2101 = vsub.f32 0.0, %v1937
  %v2102 = vsub.f32 0.0, %v1940
  %v2103 = vsub.f32 0.0, %v1943
  %v2104 = vsub.f32 0.0, %v1946
  %v2105 = vsub.f32 0.0, %v1949
  %v2106 = vsub.f32 0.0, %v1952
  %v2107 = vsub.f32 0.0, %v1955
  %v2108 = vsub.f32 0.0, %v1958
  %v2109 = vsub.f32 0.0, %v1961
  %v2110 = vsub.f32 0.0, %v1964
  %v2111 = vsub.f32 0.0, %v1967
  %v2112 = vsub.f32 0.0, %v1970
  %v2113 = vsub.f32 0.0, %v1973
  %v2114 = vsub.f32 0.0, %v1976
  %v2115 = vsub.f32 0.0, %v1979
  %v2116 = vsub.f32 0.0, %v1982
  %v2117 = vsub.f32 0.0, %v1985
  %v2118 = vsub.f32 0.0, %v1988
  %v2119 = vsub.f32 0.0, %v1991
  %v2120 = vsub.f32 0.0, %v1994
  %v2121 = vsub.f32 0.0, %v1997
  %v2122 = vsub.f32 0.0, %v2000
  %v2123 = vsub.f32 0.0, %v2003
  %v2124 = vsub.f32 0.0, %v2006
  %v2125 = vsub.f32 0.0, %v2009
  %v2126 = vsub.f32 0.0, %v2012
  %v2127 = vsub.f32 0.0, %v2015
  %v2128 = vsub.f32 0.0, %v2018
  %v2129 = vsub.f32 0.0, %v2021
  %v2130 = vsub.f32 0.0, %v2024
  %v2131 = vsub.f32 0.0, %v2027
  %v2132 = vsub.f32 0.0, %v2030
  %v2133 = vsub.f32 0.0, %v2033
  %v2134 = vsub.f32 0.0, %v2036
  %v2135 = vsub.f32 0.0, %v2039
  %v2136 = vsub.f32 0.0, %v2042
  %v2137 = vsub.f32 0.0, %v2045
  %v2138 = vsub.f32 0.0, %v2048
  %v2139 = vsub.f32 0.0, %v2051
  %v2140 = vsub.f32 0.0, %v2054
  %v2141 = vsub.f32 0.0, %v2057
  %v2142 = vsub.f32 0.0, %v2060
  %v2143 = vsub.f32 0.0, %v2063
  %v2144 = vsub.f32 0.0, %v2066
  %v2145 = vsub.f32 0.0, %v2069
  %v2146 = vsub.f32 0.0, %v2072
  %v2147 = vsub.f32 0.0, %v2075
  %v2148 = vsub.f32 0.0, %v2078
  %v2149 = vsub.f32 0.0, %v2081
  %v2150 = vsub.f32 0.0, %v2084
  %v2151 = vsub.f32 0.0, %v2087
  %v2152 = vmul.f32 %v2089, 1.442695
  %v2153 = vpow.pop %v2152
  %v2154 = vmul.f32 %v2090, 1.442695
  %v2155 = vpow.pop %v2154
  %v2156 = vmul.f32 %v2091, 1.442695
  %v2157 = vpow.pop %v2156
  %v2158 = vmul.f32 %v2092, 1.442695
  %v2159 = vpow.pop %v2158
  %v2160 = vmul.f32 %v2093, 1.442695
  %v2161 = vpow.pop %v2160
  %v2162 = vmul.f32 %v2094, 1.442695
  %v2163 = vpow.pop %v2162
  %v2164 = vmul.f32 %v2095, 1.442695
  %v2165 = vpow.pop %v2164
  %v2166 = vmul.f32 %v2096, 1.442695
  %v2167 = vpow.pop %v2166
  %v2168 = vmul.f32 %v2097, 1.442695
  %v2169 = vpow.pop %v2168
  %v2170 = vmul.f32 %v2098, 1.442695
  %v2171 = vpow.pop %v2170
  %v2172 = vmul.f32 %v2099, 1.442695
  %v2173 = vpow.pop %v2172
  %v2174 = vmul.f32 %v2100, 1.442695
  %v2175 = vpow.pop %v2174
  %v2176 = vmul.f32 %v2101, 1.442695
  %v2177 = vpow.pop %v2176
  %v2178 = vmul.f32 %v2102, 1.442695
  %v2179 = vpow.pop %v2178
  %v2180 = vmul.f32 %v2103, 1.442695
  %v2181 = vpow.pop %v2180
  %v2182 = vmul.f32 %v2104, 1.442695
  %v2183 = vpow.pop %v2182
  %v2184 = vmul.f32 %v2105, 1.442695
  %v2185 = vpow.pop %v2184
  %v2186 = vmul.f32 %v2106, 1.442695
  %v2187 = vpow.pop %v2186
  %v2188 = vmul.f32 %v2107, 1.442695
  %v2189 = vpow.pop %v2188
  %v2190 = vmul.f32 %v2108, 1.442695
  %v2191 = vpow.pop %v2190
  %v2192 = vmul.f32 %v2109, 1.442695
  %v2193 = vpow.pop %v2192
  %v2194 = vmul.f32 %v2110, 1.442695
  %v2195 = vpow.pop %v2194
  %v2196 = vmul.f32 %v2111, 1.442695
  %v2197 = vpow.pop %v2196
  %v2198 = vmul.f32 %v2112, 1.442695
  %v2199 = vpow.pop %v2198
  %v2200 = vmul.f32 %v2113, 1.442695
  %v2201 = vpow.pop %v2200
  %v2202 = vmul.f32 %v2114, 1.442695
  %v2203 = vpow.pop %v2202
  %v2204 = vmul.f32 %v2115, 1.442695
  %v2205 = vpow.pop %v2204
  %v2206 = vmul.f32 %v2116, 1.442695
  %v2207 = vpow.pop %v2206
  %v2208 = vmul.f32 %v2117, 1.442695
  %v2209 = vpow.pop %v2208
  %v2210 = vmul.f32 %v2118, 1.442695
  %v2211 = vpow.pop %v2210
  %v2212 = vmul.f32 %v2119, 1.442695
  %v2213 = vpow.pop %v2212
  %v2214 = vmul.f32 %v2120, 1.442695
  %v2215 = vpow.pop %v2214
  %v2216 = vmul.f32 %v2121, 1.442695
  %v2217 = vpow.pop %v2216
  %v2218 = vmul.f32 %v2122, 1.442695
  %v2219 = vpow.pop %v2218
  %v2220 = vmul.f32 %v2123, 1.442695
  %v2221 = vpow.pop %v2220
  %v2222 = vmul.f32 %v2124, 1.442695
  %v2223 = vpow.pop %v2222
  %v2224 = vmul.f32 %v2125, 1.442695
  %v2225 = vpow.pop %v2224
  %v2226 = vmul.f32 %v2126, 1.442695
  %v2227 = vpow.pop %v2226
  %v2228 = vmul.f32 %v2127, 1.442695
  %v2229 = vpow.pop %v2228
  %v2230 = vmul.f32 %v2128, 1.442695
  %v2231 = vpow.pop %v2230
  %v2232 = vmul.f32 %v2129, 1.442695
  %v2233 = vpow.pop %v2232
  %v2234 = vmul.f32 %v2130, 1.442695
  %v2235 = vpow.pop %v2234
  %v2236 = vmul.f32 %v2131, 1.442695
  %v2237 = vpow.pop %v2236
  %v2238 = vmul.f32 %v2132, 1.442695
  %v2239 = vpow.pop %v2238
  %v2240 = vmul.f32 %v2133, 1.442695
  %v2241 = vpow.pop %v2240
  %v2242 = vmul.f32 %v2134, 1.442695
  %v2243 = vpow.pop %v2242
  %v2244 = vmul.f32 %v2135, 1.442695
  %v2245 = vpow.pop %v2244
  %v2246 = vmul.f32 %v2136, 1.442695
  %v2247 = vpow.pop %v2246
  %v2248 = vmul.f32 %v2137, 1.442695
  %v2249 = vpow.pop %v2248
  %v2250 = vmul.f32 %v2138, 1.442695
  %v2251 = vpow.pop %v2250
  %v2252 = vmul.f32 %v2139, 1.442695
  %v2253 = vpow.pop %v2252
  %v2254 = vmul.f32 %v2140, 1.442695
  %v2255 = vpow.pop %v2254
  %v2256 = vmul.f32 %v2141, 1.442695
  %v2257 = vpow.pop %v2256
  %v2258 = vmul.f32 %v2142, 1.442695
  %v2259 = vpow.pop %v2258
  %v2260 = vmul.f32 %v2143, 1.442695
  %v2261 = vpow.pop %v2260
  %v2262 = vmul.f32 %v2144, 1.442695
  %v2263 = vpow.pop %v2262
  %v2264 = vmul.f32 %v2145, 1.442695
  %v2265 = vpow.pop %v2264
  %v2266 = vmul.f32 %v2146, 1.442695
  %v2267 = vpow.pop %v2266
  %v2268 = vmul.f32 %v2147, 1.442695
  %v2269 = vpow.pop %v2268
  %v2270 = vmul.f32 %v2148, 1.442695
  %v2271 = vpow.pop %v2270
  %v2272 = vmul.f32 %v2149, 1.442695
  %v2273 = vpow.pop %v2272
  %v2274 = vmul.f32 %v2150, 1.442695
  %v2275 = vpow.pop %v2274
  %v2276 = vmul.f32 %v2151, 1.442695
  %v2277 = vpow.pop %v2276
  %v2278 = vadd.f32 %v2153, 1.0
  %v2279 = vadd.f32 %v2155, 1.0
  %v2280 = vadd.f32 %v2157, 1.0
  %v2281 = vadd.f32 %v2159, 1.0
  %v2282 = vadd.f32 %v2161, 1.0
  %v2283 = vadd.f32 %v2163, 1.0
  %v2284 = vadd.f32 %v2165, 1.0
  %v2285 = vadd.f32 %v2167, 1.0
  %v2286 = vadd.f32 %v2169, 1.0
  %v2287 = vadd.f32 %v2171, 1.0
  %v2288 = vadd.f32 %v2173, 1.0
  %v2289 = vadd.f32 %v2175, 1.0
  %v2290 = vadd.f32 %v2177, 1.0
  %v2291 = vadd.f32 %v2179, 1.0
  %v2292 = vadd.f32 %v2181, 1.0
  %v2293 = vadd.f32 %v2183, 1.0
  %v2294 = vadd.f32 %v2185, 1.0
  %v2295 = vadd.f32 %v2187, 1.0
  %v2296 = vadd.f32 %v2189, 1.0
  %v2297 = vadd.f32 %v2191, 1.0
  %v2298 = vadd.f32 %v2193, 1.0
  %v2299 = vadd.f32 %v2195, 1.0
  %v2300 = vadd.f32 %v2197, 1.0
  %v2301 = vadd.f32 %v2199, 1.0
  %v2302 = vadd.f32 %v2201, 1.0
  %v2303 = vadd.f32 %v2203, 1.0
  %v2304 = vadd.f32 %v2205, 1.0
  %v2305 = vadd.f32 %v2207, 1.0
  %v2306 = vadd.f32 %v2209, 1.0
  %v2307 = vadd.f32 %v2211, 1.0
  %v2308 = vadd.f32 %v2213, 1.0
  %v2309 = vadd.f32 %v2215, 1.0
  %v2310 = vadd.f32 %v2217, 1.0
  %v2311 = vadd.f32 %v2219, 1.0
  %v2312 = vadd.f32 %v2221, 1.0
  %v2313 = vadd.f32 %v2223, 1.0
  %v2314 = vadd.f32 %v2225, 1.0
  %v2315 = vadd.f32 %v2227, 1.0
  %v2316 = vadd.f32 %v2229, 1.0
  %v2317 = vadd.f32 %v2231, 1.0
  %v2318 = vadd.f32 %v2233, 1.0
  %v2319 = vadd.f32 %v2235, 1.0
  %v2320 = vadd.f32 %v2237, 1.0
  %v2321 = vadd.f32 %v2239, 1.0
  %v2322 = vadd.f32 %v2241, 1.0
  %v2323 = vadd.f32 %v2243, 1.0
  %v2324 = vadd.f32 %v2245, 1.0
  %v2325 = vadd.f32 %v2247, 1.0
  %v2326 = vadd.f32 %v2249, 1.0
  %v2327 = vadd.f32 %v2251, 1.0
  %v2328 = vadd.f32 %v2253, 1.0
  %v2329 = vadd.f32 %v2255, 1.0
  %v2330 = vadd.f32 %v2257, 1.0
  %v2331 = vadd.f32 %v2259, 1.0
  %v2332 = vadd.f32 %v2261, 1.0
  %v2333 = vadd.f32 %v2263, 1.0
  %v2334 = vadd.f32 %v2265, 1.0
  %v2335 = vadd.f32 %v2267, 1.0
  %v2336 = vadd.f32 %v2269, 1.0
  %v2337 = vadd.f32 %v2271, 1.0
  %v2338 = vadd.f32 %v2273, 1.0
  %v2339 = vadd.f32 %v2275, 1.0
  %v2340 = vadd.f32 %v2277, 1.0
  %v2341 = vrcp.pop %v2278
  %v2342 = vmul.f32 %v2278, %v2341
  %v2343 = vsub.f32 1.0, %v2342
  %v2344 = vmul.f32 %v2341, %v2343
  %v2345 = vadd.f32 %v2341, %v2344
  %vm2346 = vweird.f32 %v2278
  %vm2347 = vweird.f32 %v2341
  %vm2348 = vmor %vm2346, %vm2347
  %v2349 = vsel %vm2348, %v2341, %v2345
  %v2350 = vand.u32 2147483647, %v2278
  %vm2351 = vcmp.eq.f32.partialorder %v2350, 8.507059e+37
  %v2352 = vand.u32 %v2278, 2147483648
  %v2353 = vor.u32 1.1754944e-38, %v2352
  %v2354 = vsel %vm2351, %v2353, %v2349
  %v2355 = vmul.f32 1.0, %v2354
  %v2356 = vrcp.pop %v2279
  %v2357 = vmul.f32 %v2279, %v2356
  %v2358 = vsub.f32 1.0, %v2357
  %v2359 = vmul.f32 %v2356, %v2358
  %v2360 = vadd.f32 %v2356, %v2359
  %vm2361 = vweird.f32 %v2279
  %vm2362 = vweird.f32 %v2356
  %vm2363 = vmor %vm2361, %vm2362
  %v2364 = vsel %vm2363, %v2356, %v2360
  %v2365 = vand.u32 2147483647, %v2279
  %vm2366 = vcmp.eq.f32.partialorder %v2365, 8.507059e+37
  %v2367 = vand.u32 %v2279, 2147483648
  %v2368 = vor.u32 1.1754944e-38, %v2367
  %v2369 = vsel %vm2366, %v2368, %v2364
  %v2370 = vmul.f32 1.0, %v2369
  %v2371 = vrcp.pop %v2280
  %v2372 = vmul.f32 %v2280, %v2371
  %v2373 = vsub.f32 1.0, %v2372
  %v2374 = vmul.f32 %v2371, %v2373
  %v2375 = vadd.f32 %v2371, %v2374
  %vm2376 = vweird.f32 %v2280
  %vm2377 = vweird.f32 %v2371
  %vm2378 = vmor %vm2376, %vm2377
  %v2379 = vsel %vm2378, %v2371, %v2375
  %v2380 = vand.u32 2147483647, %v2280
  %vm2381 = vcmp.eq.f32.partialorder %v2380, 8.507059e+37
  %v2382 = vand.u32 %v2280, 2147483648
  %v2383 = vor.u32 1.1754944e-38, %v2382
  %v2384 = vsel %vm2381, %v2383, %v2379
  %v2385 = vmul.f32 1.0, %v2384
  %v2386 = vrcp.pop %v2281
  %v2387 = vmul.f32 %v2281, %v2386
  %v2388 = vsub.f32 1.0, %v2387
  %v2389 = vmul.f32 %v2386, %v2388
  %v2390 = vadd.f32 %v2386, %v2389
  %vm2391 = vweird.f32 %v2281
  %vm2392 = vweird.f32 %v2386
  %vm2393 = vmor %vm2391, %vm2392
  %v2394 = vsel %vm2393, %v2386, %v2390
  %v2395 = vand.u32 2147483647, %v2281
  %vm2396 = vcmp.eq.f32.partialorder %v2395, 8.507059e+37
  %v2397 = vand.u32 %v2281, 2147483648
  %v2398 = vor.u32 1.1754944e-38, %v2397
  %v2399 = vsel %vm2396, %v2398, %v2394
  %v2400 = vmul.f32 1.0, %v2399
  %v2401 = vrcp.pop %v2282
  %v2402 = vmul.f32 %v2282, %v2401
  %v2403 = vsub.f32 1.0, %v2402
  %v2404 = vmul.f32 %v2401, %v2403
  %v2405 = vadd.f32 %v2401, %v2404
  %vm2406 = vweird.f32 %v2282
  %vm2407 = vweird.f32 %v2401
  %vm2408 = vmor %vm2406, %vm2407
  %v2409 = vsel %vm2408, %v2401, %v2405
  %v2410 = vand.u32 2147483647, %v2282
  %vm2411 = vcmp.eq.f32.partialorder %v2410, 8.507059e+37
  %v2412 = vand.u32 %v2282, 2147483648
  %v2413 = vor.u32 1.1754944e-38, %v2412
  %v2414 = vsel %vm2411, %v2413, %v2409
  %v2415 = vmul.f32 1.0, %v2414
  %v2416 = vrcp.pop %v2283
  %v2417 = vmul.f32 %v2283, %v2416
  %v2418 = vsub.f32 1.0, %v2417
  %v2419 = vmul.f32 %v2416, %v2418
  %v2420 = vadd.f32 %v2416, %v2419
  %vm2421 = vweird.f32 %v2283
  %vm2422 = vweird.f32 %v2416
  %vm2423 = vmor %vm2421, %vm2422
  %v2424 = vsel %vm2423, %v2416, %v2420
  %v2425 = vand.u32 2147483647, %v2283
  %vm2426 = vcmp.eq.f32.partialorder %v2425, 8.507059e+37
  %v2427 = vand.u32 %v2283, 2147483648
  %v2428 = vor.u32 1.1754944e-38, %v2427
  %v2429 = vsel %vm2426, %v2428, %v2424
  %v2430 = vmul.f32 1.0, %v2429
  %v2431 = vrcp.pop %v2284
  %v2432 = vmul.f32 %v2284, %v2431
  %v2433 = vsub.f32 1.0, %v2432
  %v2434 = vmul.f32 %v2431, %v2433
  %v2435 = vadd.f32 %v2431, %v2434
  %vm2436 = vweird.f32 %v2284
  %vm2437 = vweird.f32 %v2431
  %vm2438 = vmor %vm2436, %vm2437
  %v2439 = vsel %vm2438, %v2431, %v2435
  %v2440 = vand.u32 2147483647, %v2284
  %vm2441 = vcmp.eq.f32.partialorder %v2440, 8.507059e+37
  %v2442 = vand.u32 %v2284, 2147483648
  %v2443 = vor.u32 1.1754944e-38, %v2442
  %v2444 = vsel %vm2441, %v2443, %v2439
  %v2445 = vmul.f32 1.0, %v2444
  %v2446 = vrcp.pop %v2285
  %v2447 = vmul.f32 %v2285, %v2446
  %v2448 = vsub.f32 1.0, %v2447
  %v2449 = vmul.f32 %v2446, %v2448
  %v2450 = vadd.f32 %v2446, %v2449
  %vm2451 = vweird.f32 %v2285
  %vm2452 = vweird.f32 %v2446
  %vm2453 = vmor %vm2451, %vm2452
  %v2454 = vsel %vm2453, %v2446, %v2450
  %v2455 = vand.u32 2147483647, %v2285
  %vm2456 = vcmp.eq.f32.partialorder %v2455, 8.507059e+37
  %v2457 = vand.u32 %v2285, 2147483648
  %v2458 = vor.u32 1.1754944e-38, %v2457
  %v2459 = vsel %vm2456, %v2458, %v2454
  %v2460 = vmul.f32 1.0, %v2459
  %v2461 = vrcp.pop %v2286
  %v2462 = vmul.f32 %v2286, %v2461
  %v2463 = vsub.f32 1.0, %v2462
  %v2464 = vmul.f32 %v2461, %v2463
  %v2465 = vadd.f32 %v2461, %v2464
  %vm2466 = vweird.f32 %v2286
  %vm2467 = vweird.f32 %v2461
  %vm2468 = vmor %vm2466, %vm2467
  %v2469 = vsel %vm2468, %v2461, %v2465
  %v2470 = vand.u32 2147483647, %v2286
  %vm2471 = vcmp.eq.f32.partialorder %v2470, 8.507059e+37
  %v2472 = vand.u32 %v2286, 2147483648
  %v2473 = vor.u32 1.1754944e-38, %v2472
  %v2474 = vsel %vm2471, %v2473, %v2469
  %v2475 = vmul.f32 1.0, %v2474
  %v2476 = vrcp.pop %v2287
  %v2477 = vmul.f32 %v2287, %v2476
  %v2478 = vsub.f32 1.0, %v2477
  %v2479 = vmul.f32 %v2476, %v2478
  %v2480 = vadd.f32 %v2476, %v2479
  %vm2481 = vweird.f32 %v2287
  %vm2482 = vweird.f32 %v2476
  %vm2483 = vmor %vm2481, %vm2482
  %v2484 = vsel %vm2483, %v2476, %v2480
  %v2485 = vand.u32 2147483647, %v2287
  %vm2486 = vcmp.eq.f32.partialorder %v2485, 8.507059e+37
  %v2487 = vand.u32 %v2287, 2147483648
  %v2488 = vor.u32 1.1754944e-38, %v2487
  %v2489 = vsel %vm2486, %v2488, %v2484
  %v2490 = vmul.f32 1.0, %v2489
  %v2491 = vrcp.pop %v2288
  %v2492 = vmul.f32 %v2288, %v2491
  %v2493 = vsub.f32 1.0, %v2492
  %v2494 = vmul.f32 %v2491, %v2493
  %v2495 = vadd.f32 %v2491, %v2494
  %vm2496 = vweird.f32 %v2288
  %vm2497 = vweird.f32 %v2491
  %vm2498 = vmor %vm2496, %vm2497
  %v2499 = vsel %vm2498, %v2491, %v2495
  %v2500 = vand.u32 2147483647, %v2288
  %vm2501 = vcmp.eq.f32.partialorder %v2500, 8.507059e+37
  %v2502 = vand.u32 %v2288, 2147483648
  %v2503 = vor.u32 1.1754944e-38, %v2502
  %v2504 = vsel %vm2501, %v2503, %v2499
  %v2505 = vmul.f32 1.0, %v2504
  %v2506 = vrcp.pop %v2289
  %v2507 = vmul.f32 %v2289, %v2506
  %v2508 = vsub.f32 1.0, %v2507
  %v2509 = vmul.f32 %v2506, %v2508
  %v2510 = vadd.f32 %v2506, %v2509
  %vm2511 = vweird.f32 %v2289
  %vm2512 = vweird.f32 %v2506
  %vm2513 = vmor %vm2511, %vm2512
  %v2514 = vsel %vm2513, %v2506, %v2510
  %v2515 = vand.u32 2147483647, %v2289
  %vm2516 = vcmp.eq.f32.partialorder %v2515, 8.507059e+37
  %v2517 = vand.u32 %v2289, 2147483648
  %v2518 = vor.u32 1.1754944e-38, %v2517
  %v2519 = vsel %vm2516, %v2518, %v2514
  %v2520 = vmul.f32 1.0, %v2519
  %v2521 = vrcp.pop %v2290
  %v2522 = vmul.f32 %v2290, %v2521
  %v2523 = vsub.f32 1.0, %v2522
  %v2524 = vmul.f32 %v2521, %v2523
  %v2525 = vadd.f32 %v2521, %v2524
  %vm2526 = vweird.f32 %v2290
  %vm2527 = vweird.f32 %v2521
  %vm2528 = vmor %vm2526, %vm2527
  %v2529 = vsel %vm2528, %v2521, %v2525
  %v2530 = vand.u32 2147483647, %v2290
  %vm2531 = vcmp.eq.f32.partialorder %v2530, 8.507059e+37
  %v2532 = vand.u32 %v2290, 2147483648
  %v2533 = vor.u32 1.1754944e-38, %v2532
  %v2534 = vsel %vm2531, %v2533, %v2529
  %v2535 = vmul.f32 1.0, %v2534
  %v2536 = vrcp.pop %v2291
  %v2537 = vmul.f32 %v2291, %v2536
  %v2538 = vsub.f32 1.0, %v2537
  %v2539 = vmul.f32 %v2536, %v2538
  %v2540 = vadd.f32 %v2536, %v2539
  %vm2541 = vweird.f32 %v2291
  %vm2542 = vweird.f32 %v2536
  %vm2543 = vmor %vm2541, %vm2542
  %v2544 = vsel %vm2543, %v2536, %v2540
  %v2545 = vand.u32 2147483647, %v2291
  %vm2546 = vcmp.eq.f32.partialorder %v2545, 8.507059e+37
  %v2547 = vand.u32 %v2291, 2147483648
  %v2548 = vor.u32 1.1754944e-38, %v2547
  %v2549 = vsel %vm2546, %v2548, %v2544
  %v2550 = vmul.f32 1.0, %v2549
  %v2551 = vrcp.pop %v2292
  %v2552 = vmul.f32 %v2292, %v2551
  %v2553 = vsub.f32 1.0, %v2552
  %v2554 = vmul.f32 %v2551, %v2553
  %v2555 = vadd.f32 %v2551, %v2554
  %vm2556 = vweird.f32 %v2292
  %vm2557 = vweird.f32 %v2551
  %vm2558 = vmor %vm2556, %vm2557
  %v2559 = vsel %vm2558, %v2551, %v2555
  %v2560 = vand.u32 2147483647, %v2292
  %vm2561 = vcmp.eq.f32.partialorder %v2560, 8.507059e+37
  %v2562 = vand.u32 %v2292, 2147483648
  %v2563 = vor.u32 1.1754944e-38, %v2562
  %v2564 = vsel %vm2561, %v2563, %v2559
  %v2565 = vmul.f32 1.0, %v2564
  %v2566 = vrcp.pop %v2293
  %v2567 = vmul.f32 %v2293, %v2566
  %v2568 = vsub.f32 1.0, %v2567
  %v2569 = vmul.f32 %v2566, %v2568
  %v2570 = vadd.f32 %v2566, %v2569
  %vm2571 = vweird.f32 %v2293
  %vm2572 = vweird.f32 %v2566
  %vm2573 = vmor %vm2571, %vm2572
  %v2574 = vsel %vm2573, %v2566, %v2570
  %v2575 = vand.u32 2147483647, %v2293
  %vm2576 = vcmp.eq.f32.partialorder %v2575, 8.507059e+37
  %v2577 = vand.u32 %v2293, 2147483648
  %v2578 = vor.u32 1.1754944e-38, %v2577
  %v2579 = vsel %vm2576, %v2578, %v2574
  %v2580 = vmul.f32 1.0, %v2579
  %v2581 = vrcp.pop %v2294
  %v2582 = vmul.f32 %v2294, %v2581
  %v2583 = vsub.f32 1.0, %v2582
  %v2584 = vmul.f32 %v2581, %v2583
  %v2585 = vadd.f32 %v2581, %v2584
  %vm2586 = vweird.f32 %v2294
  %vm2587 = vweird.f32 %v2581
  %vm2588 = vmor %vm2586, %vm2587
  %v2589 = vsel %vm2588, %v2581, %v2585
  %v2590 = vand.u32 2147483647, %v2294
  %vm2591 = vcmp.eq.f32.partialorder %v2590, 8.507059e+37
  %v2592 = vand.u32 %v2294, 2147483648
  %v2593 = vor.u32 1.1754944e-38, %v2592
  %v2594 = vsel %vm2591, %v2593, %v2589
  %v2595 = vmul.f32 1.0, %v2594
  %v2596 = vrcp.pop %v2295
  %v2597 = vmul.f32 %v2295, %v2596
  %v2598 = vsub.f32 1.0, %v2597
  %v2599 = vmul.f32 %v2596, %v2598
  %v2600 = vadd.f32 %v2596, %v2599
  %vm2601 = vweird.f32 %v2295
  %vm2602 = vweird.f32 %v2596
  %vm2603 = vmor %vm2601, %vm2602
  %v2604 = vsel %vm2603, %v2596, %v2600
  %v2605 = vand.u32 2147483647, %v2295
  %vm2606 = vcmp.eq.f32.partialorder %v2605, 8.507059e+37
  %v2607 = vand.u32 %v2295, 2147483648
  %v2608 = vor.u32 1.1754944e-38, %v2607
  %v2609 = vsel %vm2606, %v2608, %v2604
  %v2610 = vmul.f32 1.0, %v2609
  %v2611 = vrcp.pop %v2296
  %v2612 = vmul.f32 %v2296, %v2611
  %v2613 = vsub.f32 1.0, %v2612
  %v2614 = vmul.f32 %v2611, %v2613
  %v2615 = vadd.f32 %v2611, %v2614
  %vm2616 = vweird.f32 %v2296
  %vm2617 = vweird.f32 %v2611
  %vm2618 = vmor %vm2616, %vm2617
  %v2619 = vsel %vm2618, %v2611, %v2615
  %v2620 = vand.u32 2147483647, %v2296
  %vm2621 = vcmp.eq.f32.partialorder %v2620, 8.507059e+37
  %v2622 = vand.u32 %v2296, 2147483648
  %v2623 = vor.u32 1.1754944e-38, %v2622
  %v2624 = vsel %vm2621, %v2623, %v2619
  %v2625 = vmul.f32 1.0, %v2624
  %v2626 = vrcp.pop %v2297
  %v2627 = vmul.f32 %v2297, %v2626
  %v2628 = vsub.f32 1.0, %v2627
  %v2629 = vmul.f32 %v2626, %v2628
  %v2630 = vadd.f32 %v2626, %v2629
  %vm2631 = vweird.f32 %v2297
  %vm2632 = vweird.f32 %v2626
  %vm2633 = vmor %vm2631, %vm2632
  %v2634 = vsel %vm2633, %v2626, %v2630
  %v2635 = vand.u32 2147483647, %v2297
  %vm2636 = vcmp.eq.f32.partialorder %v2635, 8.507059e+37
  %v2637 = vand.u32 %v2297, 2147483648
  %v2638 = vor.u32 1.1754944e-38, %v2637
  %v2639 = vsel %vm2636, %v2638, %v2634
  %v2640 = vmul.f32 1.0, %v2639
  %v2641 = vrcp.pop %v2298
  %v2642 = vmul.f32 %v2298, %v2641
  %v2643 = vsub.f32 1.0, %v2642
  %v2644 = vmul.f32 %v2641, %v2643
  %v2645 = vadd.f32 %v2641, %v2644
  %vm2646 = vweird.f32 %v2298
  %vm2647 = vweird.f32 %v2641
  %vm2648 = vmor %vm2646, %vm2647
  %v2649 = vsel %vm2648, %v2641, %v2645
  %v2650 = vand.u32 2147483647, %v2298
  %vm2651 = vcmp.eq.f32.partialorder %v2650, 8.507059e+37
  %v2652 = vand.u32 %v2298, 2147483648
  %v2653 = vor.u32 1.1754944e-38, %v2652
  %v2654 = vsel %vm2651, %v2653, %v2649
  %v2655 = vmul.f32 1.0, %v2654
  %v2656 = vrcp.pop %v2299
  %v2657 = vmul.f32 %v2299, %v2656
  %v2658 = vsub.f32 1.0, %v2657
  %v2659 = vmul.f32 %v2656, %v2658
  %v2660 = vadd.f32 %v2656, %v2659
  %vm2661 = vweird.f32 %v2299
  %vm2662 = vweird.f32 %v2656
  %vm2663 = vmor %vm2661, %vm2662
  %v2664 = vsel %vm2663, %v2656, %v2660
  %v2665 = vand.u32 2147483647, %v2299
  %vm2666 = vcmp.eq.f32.partialorder %v2665, 8.507059e+37
  %v2667 = vand.u32 %v2299, 2147483648
  %v2668 = vor.u32 1.1754944e-38, %v2667
  %v2669 = vsel %vm2666, %v2668, %v2664
  %v2670 = vmul.f32 1.0, %v2669
  %v2671 = vrcp.pop %v2300
  %v2672 = vmul.f32 %v2300, %v2671
  %v2673 = vsub.f32 1.0, %v2672
  %v2674 = vmul.f32 %v2671, %v2673
  %v2675 = vadd.f32 %v2671, %v2674
  %vm2676 = vweird.f32 %v2300
  %vm2677 = vweird.f32 %v2671
  %vm2678 = vmor %vm2676, %vm2677
  %v2679 = vsel %vm2678, %v2671, %v2675
  %v2680 = vand.u32 2147483647, %v2300
  %vm2681 = vcmp.eq.f32.partialorder %v2680, 8.507059e+37
  %v2682 = vand.u32 %v2300, 2147483648
  %v2683 = vor.u32 1.1754944e-38, %v2682
  %v2684 = vsel %vm2681, %v2683, %v2679
  %v2685 = vmul.f32 1.0, %v2684
  %v2686 = vrcp.pop %v2301
  %v2687 = vmul.f32 %v2301, %v2686
  %v2688 = vsub.f32 1.0, %v2687
  %v2689 = vmul.f32 %v2686, %v2688
  %v2690 = vadd.f32 %v2686, %v2689
  %vm2691 = vweird.f32 %v2301
  %vm2692 = vweird.f32 %v2686
  %vm2693 = vmor %vm2691, %vm2692
  %v2694 = vsel %vm2693, %v2686, %v2690
  %v2695 = vand.u32 2147483647, %v2301
  %vm2696 = vcmp.eq.f32.partialorder %v2695, 8.507059e+37
  %v2697 = vand.u32 %v2301, 2147483648
  %v2698 = vor.u32 1.1754944e-38, %v2697
  %v2699 = vsel %vm2696, %v2698, %v2694
  %v2700 = vmul.f32 1.0, %v2699
  %v2701 = vrcp.pop %v2302
  %v2702 = vmul.f32 %v2302, %v2701
  %v2703 = vsub.f32 1.0, %v2702
  %v2704 = vmul.f32 %v2701, %v2703
  %v2705 = vadd.f32 %v2701, %v2704
  %vm2706 = vweird.f32 %v2302
  %vm2707 = vweird.f32 %v2701
  %vm2708 = vmor %vm2706, %vm2707
  %v2709 = vsel %vm2708, %v2701, %v2705
  %v2710 = vand.u32 2147483647, %v2302
  %vm2711 = vcmp.eq.f32.partialorder %v2710, 8.507059e+37
  %v2712 = vand.u32 %v2302, 2147483648
  %v2713 = vor.u32 1.1754944e-38, %v2712
  %v2714 = vsel %vm2711, %v2713, %v2709
  %v2715 = vmul.f32 1.0, %v2714
  %v2716 = vrcp.pop %v2303
  %v2717 = vmul.f32 %v2303, %v2716
  %v2718 = vsub.f32 1.0, %v2717
  %v2719 = vmul.f32 %v2716, %v2718
  %v2720 = vadd.f32 %v2716, %v2719
  %vm2721 = vweird.f32 %v2303
  %vm2722 = vweird.f32 %v2716
  %vm2723 = vmor %vm2721, %vm2722
  %v2724 = vsel %vm2723, %v2716, %v2720
  %v2725 = vand.u32 2147483647, %v2303
  %vm2726 = vcmp.eq.f32.partialorder %v2725, 8.507059e+37
  %v2727 = vand.u32 %v2303, 2147483648
  %v2728 = vor.u32 1.1754944e-38, %v2727
  %v2729 = vsel %vm2726, %v2728, %v2724
  %v2730 = vmul.f32 1.0, %v2729
  %v2731 = vrcp.pop %v2304
  %v2732 = vmul.f32 %v2304, %v2731
  %v2733 = vsub.f32 1.0, %v2732
  %v2734 = vmul.f32 %v2731, %v2733
  %v2735 = vadd.f32 %v2731, %v2734
  %vm2736 = vweird.f32 %v2304
  %vm2737 = vweird.f32 %v2731
  %vm2738 = vmor %vm2736, %vm2737
  %v2739 = vsel %vm2738, %v2731, %v2735
  %v2740 = vand.u32 2147483647, %v2304
  %vm2741 = vcmp.eq.f32.partialorder %v2740, 8.507059e+37
  %v2742 = vand.u32 %v2304, 2147483648
  %v2743 = vor.u32 1.1754944e-38, %v2742
  %v2744 = vsel %vm2741, %v2743, %v2739
  %v2745 = vmul.f32 1.0, %v2744
  %v2746 = vrcp.pop %v2305
  %v2747 = vmul.f32 %v2305, %v2746
  %v2748 = vsub.f32 1.0, %v2747
  %v2749 = vmul.f32 %v2746, %v2748
  %v2750 = vadd.f32 %v2746, %v2749
  %vm2751 = vweird.f32 %v2305
  %vm2752 = vweird.f32 %v2746
  %vm2753 = vmor %vm2751, %vm2752
  %v2754 = vsel %vm2753, %v2746, %v2750
  %v2755 = vand.u32 2147483647, %v2305
  %vm2756 = vcmp.eq.f32.partialorder %v2755, 8.507059e+37
  %v2757 = vand.u32 %v2305, 2147483648
  %v2758 = vor.u32 1.1754944e-38, %v2757
  %v2759 = vsel %vm2756, %v2758, %v2754
  %v2760 = vmul.f32 1.0, %v2759
  %v2761 = vrcp.pop %v2306
  %v2762 = vmul.f32 %v2306, %v2761
  %v2763 = vsub.f32 1.0, %v2762
  %v2764 = vmul.f32 %v2761, %v2763
  %v2765 = vadd.f32 %v2761, %v2764
  %vm2766 = vweird.f32 %v2306
  %vm2767 = vweird.f32 %v2761
  %vm2768 = vmor %vm2766, %vm2767
  %v2769 = vsel %vm2768, %v2761, %v2765
  %v2770 = vand.u32 2147483647, %v2306
  %vm2771 = vcmp.eq.f32.partialorder %v2770, 8.507059e+37
  %v2772 = vand.u32 %v2306, 2147483648
  %v2773 = vor.u32 1.1754944e-38, %v2772
  %v2774 = vsel %vm2771, %v2773, %v2769
  %v2775 = vmul.f32 1.0, %v2774
  %v2776 = vrcp.pop %v2307
  %v2777 = vmul.f32 %v2307, %v2776
  %v2778 = vsub.f32 1.0, %v2777
  %v2779 = vmul.f32 %v2776, %v2778
  %v2780 = vadd.f32 %v2776, %v2779
  %vm2781 = vweird.f32 %v2307
  %vm2782 = vweird.f32 %v2776
  %vm2783 = vmor %vm2781, %vm2782
  %v2784 = vsel %vm2783, %v2776, %v2780
  %v2785 = vand.u32 2147483647, %v2307
  %vm2786 = vcmp.eq.f32.partialorder %v2785, 8.507059e+37
  %v2787 = vand.u32 %v2307, 2147483648
  %v2788 = vor.u32 1.1754944e-38, %v2787
  %v2789 = vsel %vm2786, %v2788, %v2784
  %v2790 = vmul.f32 1.0, %v2789
  %v2791 = vrcp.pop %v2308
  %v2792 = vmul.f32 %v2308, %v2791
  %v2793 = vsub.f32 1.0, %v2792
  %v2794 = vmul.f32 %v2791, %v2793
  %v2795 = vadd.f32 %v2791, %v2794
  %vm2796 = vweird.f32 %v2308
  %vm2797 = vweird.f32 %v2791
  %vm2798 = vmor %vm2796, %vm2797
  %v2799 = vsel %vm2798, %v2791, %v2795
  %v2800 = vand.u32 2147483647, %v2308
  %vm2801 = vcmp.eq.f32.partialorder %v2800, 8.507059e+37
  %v2802 = vand.u32 %v2308, 2147483648
  %v2803 = vor.u32 1.1754944e-38, %v2802
  %v2804 = vsel %vm2801, %v2803, %v2799
  %v2805 = vmul.f32 1.0, %v2804
  %v2806 = vrcp.pop %v2309
  %v2807 = vmul.f32 %v2309, %v2806
  %v2808 = vsub.f32 1.0, %v2807
  %v2809 = vmul.f32 %v2806, %v2808
  %v2810 = vadd.f32 %v2806, %v2809
  %vm2811 = vweird.f32 %v2309
  %vm2812 = vweird.f32 %v2806
  %vm2813 = vmor %vm2811, %vm2812
  %v2814 = vsel %vm2813, %v2806, %v2810
  %v2815 = vand.u32 2147483647, %v2309
  %vm2816 = vcmp.eq.f32.partialorder %v2815, 8.507059e+37
  %v2817 = vand.u32 %v2309, 2147483648
  %v2818 = vor.u32 1.1754944e-38, %v2817
  %v2819 = vsel %vm2816, %v2818, %v2814
  %v2820 = vmul.f32 1.0, %v2819
  %v2821 = vrcp.pop %v2310
  %v2822 = vmul.f32 %v2310, %v2821
  %v2823 = vsub.f32 1.0, %v2822
  %v2824 = vmul.f32 %v2821, %v2823
  %v2825 = vadd.f32 %v2821, %v2824
  %vm2826 = vweird.f32 %v2310
  %vm2827 = vweird.f32 %v2821
  %vm2828 = vmor %vm2826, %vm2827
  %v2829 = vsel %vm2828, %v2821, %v2825
  %v2830 = vand.u32 2147483647, %v2310
  %vm2831 = vcmp.eq.f32.partialorder %v2830, 8.507059e+37
  %v2832 = vand.u32 %v2310, 2147483648
  %v2833 = vor.u32 1.1754944e-38, %v2832
  %v2834 = vsel %vm2831, %v2833, %v2829
  %v2835 = vmul.f32 1.0, %v2834
  %v2836 = vrcp.pop %v2311
  %v2837 = vmul.f32 %v2311, %v2836
  %v2838 = vsub.f32 1.0, %v2837
  %v2839 = vmul.f32 %v2836, %v2838
  %v2840 = vadd.f32 %v2836, %v2839
  %vm2841 = vweird.f32 %v2311
  %vm2842 = vweird.f32 %v2836
  %vm2843 = vmor %vm2841, %vm2842
  %v2844 = vsel %vm2843, %v2836, %v2840
  %v2845 = vand.u32 2147483647, %v2311
  %vm2846 = vcmp.eq.f32.partialorder %v2845, 8.507059e+37
  %v2847 = vand.u32 %v2311, 2147483648
  %v2848 = vor.u32 1.1754944e-38, %v2847
  %v2849 = vsel %vm2846, %v2848, %v2844
  %v2850 = vmul.f32 1.0, %v2849
  %v2851 = vrcp.pop %v2312
  %v2852 = vmul.f32 %v2312, %v2851
  %v2853 = vsub.f32 1.0, %v2852
  %v2854 = vmul.f32 %v2851, %v2853
  %v2855 = vadd.f32 %v2851, %v2854
  %vm2856 = vweird.f32 %v2312
  %vm2857 = vweird.f32 %v2851
  %vm2858 = vmor %vm2856, %vm2857
  %v2859 = vsel %vm2858, %v2851, %v2855
  %v2860 = vand.u32 2147483647, %v2312
  %vm2861 = vcmp.eq.f32.partialorder %v2860, 8.507059e+37
  %v2862 = vand.u32 %v2312, 2147483648
  %v2863 = vor.u32 1.1754944e-38, %v2862
  %v2864 = vsel %vm2861, %v2863, %v2859
  %v2865 = vmul.f32 1.0, %v2864
  %v2866 = vrcp.pop %v2313
  %v2867 = vmul.f32 %v2313, %v2866
  %v2868 = vsub.f32 1.0, %v2867
  %v2869 = vmul.f32 %v2866, %v2868
  %v2870 = vadd.f32 %v2866, %v2869
  %vm2871 = vweird.f32 %v2313
  %vm2872 = vweird.f32 %v2866
  %vm2873 = vmor %vm2871, %vm2872
  %v2874 = vsel %vm2873, %v2866, %v2870
  %v2875 = vand.u32 2147483647, %v2313
  %vm2876 = vcmp.eq.f32.partialorder %v2875, 8.507059e+37
  %v2877 = vand.u32 %v2313, 2147483648
  %v2878 = vor.u32 1.1754944e-38, %v2877
  %v2879 = vsel %vm2876, %v2878, %v2874
  %v2880 = vmul.f32 1.0, %v2879
  %v2881 = vrcp.pop %v2314
  %v2882 = vmul.f32 %v2314, %v2881
  %v2883 = vsub.f32 1.0, %v2882
  %v2884 = vmul.f32 %v2881, %v2883
  %v2885 = vadd.f32 %v2881, %v2884
  %vm2886 = vweird.f32 %v2314
  %vm2887 = vweird.f32 %v2881
  %vm2888 = vmor %vm2886, %vm2887
  %v2889 = vsel %vm2888, %v2881, %v2885
  %v2890 = vand.u32 2147483647, %v2314
  %vm2891 = vcmp.eq.f32.partialorder %v2890, 8.507059e+37
  %v2892 = vand.u32 %v2314, 2147483648
  %v2893 = vor.u32 1.1754944e-38, %v2892
  %v2894 = vsel %vm2891, %v2893, %v2889
  %v2895 = vmul.f32 1.0, %v2894
  %v2896 = vrcp.pop %v2315
  %v2897 = vmul.f32 %v2315, %v2896
  %v2898 = vsub.f32 1.0, %v2897
  %v2899 = vmul.f32 %v2896, %v2898
  %v2900 = vadd.f32 %v2896, %v2899
  %vm2901 = vweird.f32 %v2315
  %vm2902 = vweird.f32 %v2896
  %vm2903 = vmor %vm2901, %vm2902
  %v2904 = vsel %vm2903, %v2896, %v2900
  %v2905 = vand.u32 2147483647, %v2315
  %vm2906 = vcmp.eq.f32.partialorder %v2905, 8.507059e+37
  %v2907 = vand.u32 %v2315, 2147483648
  %v2908 = vor.u32 1.1754944e-38, %v2907
  %v2909 = vsel %vm2906, %v2908, %v2904
  %v2910 = vmul.f32 1.0, %v2909
  %v2911 = vrcp.pop %v2316
  %v2912 = vmul.f32 %v2316, %v2911
  %v2913 = vsub.f32 1.0, %v2912
  %v2914 = vmul.f32 %v2911, %v2913
  %v2915 = vadd.f32 %v2911, %v2914
  %vm2916 = vweird.f32 %v2316
  %vm2917 = vweird.f32 %v2911
  %vm2918 = vmor %vm2916, %vm2917
  %v2919 = vsel %vm2918, %v2911, %v2915
  %v2920 = vand.u32 2147483647, %v2316
  %vm2921 = vcmp.eq.f32.partialorder %v2920, 8.507059e+37
  %v2922 = vand.u32 %v2316, 2147483648
  %v2923 = vor.u32 1.1754944e-38, %v2922
  %v2924 = vsel %vm2921, %v2923, %v2919
  %v2925 = vmul.f32 1.0, %v2924
  %v2926 = vrcp.pop %v2317
  %v2927 = vmul.f32 %v2317, %v2926
  %v2928 = vsub.f32 1.0, %v2927
  %v2929 = vmul.f32 %v2926, %v2928
  %v2930 = vadd.f32 %v2926, %v2929
  %vm2931 = vweird.f32 %v2317
  %vm2932 = vweird.f32 %v2926
  %vm2933 = vmor %vm2931, %vm2932
  %v2934 = vsel %vm2933, %v2926, %v2930
  %v2935 = vand.u32 2147483647, %v2317
  %vm2936 = vcmp.eq.f32.partialorder %v2935, 8.507059e+37
  %v2937 = vand.u32 %v2317, 2147483648
  %v2938 = vor.u32 1.1754944e-38, %v2937
  %v2939 = vsel %vm2936, %v2938, %v2934
  %v2940 = vmul.f32 1.0, %v2939
  %v2941 = vrcp.pop %v2318
  %v2942 = vmul.f32 %v2318, %v2941
  %v2943 = vsub.f32 1.0, %v2942
  %v2944 = vmul.f32 %v2941, %v2943
  %v2945 = vadd.f32 %v2941, %v2944
  %vm2946 = vweird.f32 %v2318
  %vm2947 = vweird.f32 %v2941
  %vm2948 = vmor %vm2946, %vm2947
  %v2949 = vsel %vm2948, %v2941, %v2945
  %v2950 = vand.u32 2147483647, %v2318
  %vm2951 = vcmp.eq.f32.partialorder %v2950, 8.507059e+37
  %v2952 = vand.u32 %v2318, 2147483648
  %v2953 = vor.u32 1.1754944e-38, %v2952
  %v2954 = vsel %vm2951, %v2953, %v2949
  %v2955 = vmul.f32 1.0, %v2954
  %v2956 = vrcp.pop %v2319
  %v2957 = vmul.f32 %v2319, %v2956
  %v2958 = vsub.f32 1.0, %v2957
  %v2959 = vmul.f32 %v2956, %v2958
  %v2960 = vadd.f32 %v2956, %v2959
  %vm2961 = vweird.f32 %v2319
  %vm2962 = vweird.f32 %v2956
  %vm2963 = vmor %vm2961, %vm2962
  %v2964 = vsel %vm2963, %v2956, %v2960
  %v2965 = vand.u32 2147483647, %v2319
  %vm2966 = vcmp.eq.f32.partialorder %v2965, 8.507059e+37
  %v2967 = vand.u32 %v2319, 2147483648
  %v2968 = vor.u32 1.1754944e-38, %v2967
  %v2969 = vsel %vm2966, %v2968, %v2964
  %v2970 = vmul.f32 1.0, %v2969
  %v2971 = vrcp.pop %v2320
  %v2972 = vmul.f32 %v2320, %v2971
  %v2973 = vsub.f32 1.0, %v2972
  %v2974 = vmul.f32 %v2971, %v2973
  %v2975 = vadd.f32 %v2971, %v2974
  %vm2976 = vweird.f32 %v2320
  %vm2977 = vweird.f32 %v2971
  %vm2978 = vmor %vm2976, %vm2977
  %v2979 = vsel %vm2978, %v2971, %v2975
  %v2980 = vand.u32 2147483647, %v2320
  %vm2981 = vcmp.eq.f32.partialorder %v2980, 8.507059e+37
  %v2982 = vand.u32 %v2320, 2147483648
  %v2983 = vor.u32 1.1754944e-38, %v2982
  %v2984 = vsel %vm2981, %v2983, %v2979
  %v2985 = vmul.f32 1.0, %v2984
  %v2986 = vrcp.pop %v2321
  %v2987 = vmul.f32 %v2321, %v2986
  %v2988 = vsub.f32 1.0, %v2987
  %v2989 = vmul.f32 %v2986, %v2988
  %v2990 = vadd.f32 %v2986, %v2989
  %vm2991 = vweird.f32 %v2321
  %vm2992 = vweird.f32 %v2986
  %vm2993 = vmor %vm2991, %vm2992
  %v2994 = vsel %vm2993, %v2986, %v2990
  %v2995 = vand.u32 2147483647, %v2321
  %vm2996 = vcmp.eq.f32.partialorder %v2995, 8.507059e+37
  %v2997 = vand.u32 %v2321, 2147483648
  %v2998 = vor.u32 1.1754944e-38, %v2997
  %v2999 = vsel %vm2996, %v2998, %v2994
  %v3000 = vmul.f32 1.0, %v2999
  %v3001 = vrcp.pop %v2322
  %v3002 = vmul.f32 %v2322, %v3001
  %v3003 = vsub.f32 1.0, %v3002
  %v3004 = vmul.f32 %v3001, %v3003
  %v3005 = vadd.f32 %v3001, %v3004
  %vm3006 = vweird.f32 %v2322
  %vm3007 = vweird.f32 %v3001
  %vm3008 = vmor %vm3006, %vm3007
  %v3009 = vsel %vm3008, %v3001, %v3005
  %v3010 = vand.u32 2147483647, %v2322
  %vm3011 = vcmp.eq.f32.partialorder %v3010, 8.507059e+37
  %v3012 = vand.u32 %v2322, 2147483648
  %v3013 = vor.u32 1.1754944e-38, %v3012
  %v3014 = vsel %vm3011, %v3013, %v3009
  %v3015 = vmul.f32 1.0, %v3014
  %v3016 = vrcp.pop %v2323
  %v3017 = vmul.f32 %v2323, %v3016
  %v3018 = vsub.f32 1.0, %v3017
  %v3019 = vmul.f32 %v3016, %v3018
  %v3020 = vadd.f32 %v3016, %v3019
  %vm3021 = vweird.f32 %v2323
  %vm3022 = vweird.f32 %v3016
  %vm3023 = vmor %vm3021, %vm3022
  %v3024 = vsel %vm3023, %v3016, %v3020
  %v3025 = vand.u32 2147483647, %v2323
  %vm3026 = vcmp.eq.f32.partialorder %v3025, 8.507059e+37
  %v3027 = vand.u32 %v2323, 2147483648
  %v3028 = vor.u32 1.1754944e-38, %v3027
  %v3029 = vsel %vm3026, %v3028, %v3024
  %v3030 = vmul.f32 1.0, %v3029
  %v3031 = vrcp.pop %v2324
  %v3032 = vmul.f32 %v2324, %v3031
  %v3033 = vsub.f32 1.0, %v3032
  %v3034 = vmul.f32 %v3031, %v3033
  %v3035 = vadd.f32 %v3031, %v3034
  %vm3036 = vweird.f32 %v2324
  %vm3037 = vweird.f32 %v3031
  %vm3038 = vmor %vm3036, %vm3037
  %v3039 = vsel %vm3038, %v3031, %v3035
  %v3040 = vand.u32 2147483647, %v2324
  %vm3041 = vcmp.eq.f32.partialorder %v3040, 8.507059e+37
  %v3042 = vand.u32 %v2324, 2147483648
  %v3043 = vor.u32 1.1754944e-38, %v3042
  %v3044 = vsel %vm3041, %v3043, %v3039
  %v3045 = vmul.f32 1.0, %v3044
  %v3046 = vrcp.pop %v2325
  %v3047 = vmul.f32 %v2325, %v3046
  %v3048 = vsub.f32 1.0, %v3047
  %v3049 = vmul.f32 %v3046, %v3048
  %v3050 = vadd.f32 %v3046, %v3049
  %vm3051 = vweird.f32 %v2325
  %vm3052 = vweird.f32 %v3046
  %vm3053 = vmor %vm3051, %vm3052
  %v3054 = vsel %vm3053, %v3046, %v3050
  %v3055 = vand.u32 2147483647, %v2325
  %vm3056 = vcmp.eq.f32.partialorder %v3055, 8.507059e+37
  %v3057 = vand.u32 %v2325, 2147483648
  %v3058 = vor.u32 1.1754944e-38, %v3057
  %v3059 = vsel %vm3056, %v3058, %v3054
  %v3060 = vmul.f32 1.0, %v3059
  %v3061 = vrcp.pop %v2326
  %v3062 = vmul.f32 %v2326, %v3061
  %v3063 = vsub.f32 1.0, %v3062
  %v3064 = vmul.f32 %v3061, %v3063
  %v3065 = vadd.f32 %v3061, %v3064
  %vm3066 = vweird.f32 %v2326
  %vm3067 = vweird.f32 %v3061
  %vm3068 = vmor %vm3066, %vm3067
  %v3069 = vsel %vm3068, %v3061, %v3065
  %v3070 = vand.u32 2147483647, %v2326
  %vm3071 = vcmp.eq.f32.partialorder %v3070, 8.507059e+37
  %v3072 = vand.u32 %v2326, 2147483648
  %v3073 = vor.u32 1.1754944e-38, %v3072
  %v3074 = vsel %vm3071, %v3073, %v3069
  %v3075 = vmul.f32 1.0, %v3074
  %v3076 = vrcp.pop %v2327
  %v3077 = vmul.f32 %v2327, %v3076
  %v3078 = vsub.f32 1.0, %v3077
  %v3079 = vmul.f32 %v3076, %v3078
  %v3080 = vadd.f32 %v3076, %v3079
  %vm3081 = vweird.f32 %v2327
  %vm3082 = vweird.f32 %v3076
  %vm3083 = vmor %vm3081, %vm3082
  %v3084 = vsel %vm3083, %v3076, %v3080
  %v3085 = vand.u32 2147483647, %v2327
  %vm3086 = vcmp.eq.f32.partialorder %v3085, 8.507059e+37
  %v3087 = vand.u32 %v2327, 2147483648
  %v3088 = vor.u32 1.1754944e-38, %v3087
  %v3089 = vsel %vm3086, %v3088, %v3084
  %v3090 = vmul.f32 1.0, %v3089
  %v3091 = vrcp.pop %v2328
  %v3092 = vmul.f32 %v2328, %v3091
  %v3093 = vsub.f32 1.0, %v3092
  %v3094 = vmul.f32 %v3091, %v3093
  %v3095 = vadd.f32 %v3091, %v3094
  %vm3096 = vweird.f32 %v2328
  %vm3097 = vweird.f32 %v3091
  %vm3098 = vmor %vm3096, %vm3097
  %v3099 = vsel %vm3098, %v3091, %v3095
  %v3100 = vand.u32 2147483647, %v2328
  %vm3101 = vcmp.eq.f32.partialorder %v3100, 8.507059e+37
  %v3102 = vand.u32 %v2328, 2147483648
  %v3103 = vor.u32 1.1754944e-38, %v3102
  %v3104 = vsel %vm3101, %v3103, %v3099
  %v3105 = vmul.f32 1.0, %v3104
  %v3106 = vrcp.pop %v2329
  %v3107 = vmul.f32 %v2329, %v3106
  %v3108 = vsub.f32 1.0, %v3107
  %v3109 = vmul.f32 %v3106, %v3108
  %v3110 = vadd.f32 %v3106, %v3109
  %vm3111 = vweird.f32 %v2329
  %vm3112 = vweird.f32 %v3106
  %vm3113 = vmor %vm3111, %vm3112
  %v3114 = vsel %vm3113, %v3106, %v3110
  %v3115 = vand.u32 2147483647, %v2329
  %vm3116 = vcmp.eq.f32.partialorder %v3115, 8.507059e+37
  %v3117 = vand.u32 %v2329, 2147483648
  %v3118 = vor.u32 1.1754944e-38, %v3117
  %v3119 = vsel %vm3116, %v3118, %v3114
  %v3120 = vmul.f32 1.0, %v3119
  %v3121 = vrcp.pop %v2330
  %v3122 = vmul.f32 %v2330, %v3121
  %v3123 = vsub.f32 1.0, %v3122
  %v3124 = vmul.f32 %v3121, %v3123
  %v3125 = vadd.f32 %v3121, %v3124
  %vm3126 = vweird.f32 %v2330
  %vm3127 = vweird.f32 %v3121
  %vm3128 = vmor %vm3126, %vm3127
  %v3129 = vsel %vm3128, %v3121, %v3125
  %v3130 = vand.u32 2147483647, %v2330
  %vm3131 = vcmp.eq.f32.partialorder %v3130, 8.507059e+37
  %v3132 = vand.u32 %v2330, 2147483648
  %v3133 = vor.u32 1.1754944e-38, %v3132
  %v3134 = vsel %vm3131, %v3133, %v3129
  %v3135 = vmul.f32 1.0, %v3134
  %v3136 = vrcp.pop %v2331
  %v3137 = vmul.f32 %v2331, %v3136
  %v3138 = vsub.f32 1.0, %v3137
  %v3139 = vmul.f32 %v3136, %v3138
  %v3140 = vadd.f32 %v3136, %v3139
  %vm3141 = vweird.f32 %v2331
  %vm3142 = vweird.f32 %v3136
  %vm3143 = vmor %vm3141, %vm3142
  %v3144 = vsel %vm3143, %v3136, %v3140
  %v3145 = vand.u32 2147483647, %v2331
  %vm3146 = vcmp.eq.f32.partialorder %v3145, 8.507059e+37
  %v3147 = vand.u32 %v2331, 2147483648
  %v3148 = vor.u32 1.1754944e-38, %v3147
  %v3149 = vsel %vm3146, %v3148, %v3144
  %v3150 = vmul.f32 1.0, %v3149
  %v3151 = vrcp.pop %v2332
  %v3152 = vmul.f32 %v2332, %v3151
  %v3153 = vsub.f32 1.0, %v3152
  %v3154 = vmul.f32 %v3151, %v3153
  %v3155 = vadd.f32 %v3151, %v3154
  %vm3156 = vweird.f32 %v2332
  %vm3157 = vweird.f32 %v3151
  %vm3158 = vmor %vm3156, %vm3157
  %v3159 = vsel %vm3158, %v3151, %v3155
  %v3160 = vand.u32 2147483647, %v2332
  %vm3161 = vcmp.eq.f32.partialorder %v3160, 8.507059e+37
  %v3162 = vand.u32 %v2332, 2147483648
  %v3163 = vor.u32 1.1754944e-38, %v3162
  %v3164 = vsel %vm3161, %v3163, %v3159
  %v3165 = vmul.f32 1.0, %v3164
  %v3166 = vrcp.pop %v2333
  %v3167 = vmul.f32 %v2333, %v3166
  %v3168 = vsub.f32 1.0, %v3167
  %v3169 = vmul.f32 %v3166, %v3168
  %v3170 = vadd.f32 %v3166, %v3169
  %vm3171 = vweird.f32 %v2333
  %vm3172 = vweird.f32 %v3166
  %vm3173 = vmor %vm3171, %vm3172
  %v3174 = vsel %vm3173, %v3166, %v3170
  %v3175 = vand.u32 2147483647, %v2333
  %vm3176 = vcmp.eq.f32.partialorder %v3175, 8.507059e+37
  %v3177 = vand.u32 %v2333, 2147483648
  %v3178 = vor.u32 1.1754944e-38, %v3177
  %v3179 = vsel %vm3176, %v3178, %v3174
  %v3180 = vmul.f32 1.0, %v3179
  %v3181 = vrcp.pop %v2334
  %v3182 = vmul.f32 %v2334, %v3181
  %v3183 = vsub.f32 1.0, %v3182
  %v3184 = vmul.f32 %v3181, %v3183
  %v3185 = vadd.f32 %v3181, %v3184
  %vm3186 = vweird.f32 %v2334
  %vm3187 = vweird.f32 %v3181
  %vm3188 = vmor %vm3186, %vm3187
  %v3189 = vsel %vm3188, %v3181, %v3185
  %v3190 = vand.u32 2147483647, %v2334
  %vm3191 = vcmp.eq.f32.partialorder %v3190, 8.507059e+37
  %v3192 = vand.u32 %v2334, 2147483648
  %v3193 = vor.u32 1.1754944e-38, %v3192
  %v3194 = vsel %vm3191, %v3193, %v3189
  %v3195 = vmul.f32 1.0, %v3194
  %v3196 = vrcp.pop %v2335
  %v3197 = vmul.f32 %v2335, %v3196
  %v3198 = vsub.f32 1.0, %v3197
  %v3199 = vmul.f32 %v3196, %v3198
  %v3200 = vadd.f32 %v3196, %v3199
  %vm3201 = vweird.f32 %v2335
  %vm3202 = vweird.f32 %v3196
  %vm3203 = vmor %vm3201, %vm3202
  %v3204 = vsel %vm3203, %v3196, %v3200
  %v3205 = vand.u32 2147483647, %v2335
  %vm3206 = vcmp.eq.f32.partialorder %v3205, 8.507059e+37
  %v3207 = vand.u32 %v2335, 2147483648
  %v3208 = vor.u32 1.1754944e-38, %v3207
  %v3209 = vsel %vm3206, %v3208, %v3204
  %v3210 = vmul.f32 1.0, %v3209
  %v3211 = vrcp.pop %v2336
  %v3212 = vmul.f32 %v2336, %v3211
  %v3213 = vsub.f32 1.0, %v3212
  %v3214 = vmul.f32 %v3211, %v3213
  %v3215 = vadd.f32 %v3211, %v3214
  %vm3216 = vweird.f32 %v2336
  %vm3217 = vweird.f32 %v3211
  %vm3218 = vmor %vm3216, %vm3217
  %v3219 = vsel %vm3218, %v3211, %v3215
  %v3220 = vand.u32 2147483647, %v2336
  %vm3221 = vcmp.eq.f32.partialorder %v3220, 8.507059e+37
  %v3222 = vand.u32 %v2336, 2147483648
  %v3223 = vor.u32 1.1754944e-38, %v3222
  %v3224 = vsel %vm3221, %v3223, %v3219
  %v3225 = vmul.f32 1.0, %v3224
  %v3226 = vrcp.pop %v2337
  %v3227 = vmul.f32 %v2337, %v3226
  %v3228 = vsub.f32 1.0, %v3227
  %v3229 = vmul.f32 %v3226, %v3228
  %v3230 = vadd.f32 %v3226, %v3229
  %vm3231 = vweird.f32 %v2337
  %vm3232 = vweird.f32 %v3226
  %vm3233 = vmor %vm3231, %vm3232
  %v3234 = vsel %vm3233, %v3226, %v3230
  %v3235 = vand.u32 2147483647, %v2337
  %vm3236 = vcmp.eq.f32.partialorder %v3235, 8.507059e+37
  %v3237 = vand.u32 %v2337, 2147483648
  %v3238 = vor.u32 1.1754944e-38, %v3237
  %v3239 = vsel %vm3236, %v3238, %v3234
  %v3240 = vmul.f32 1.0, %v3239
  %v3241 = vrcp.pop %v2338
  %v3242 = vmul.f32 %v2338, %v3241
  %v3243 = vsub.f32 1.0, %v3242
  %v3244 = vmul.f32 %v3241, %v3243
  %v3245 = vadd.f32 %v3241, %v3244
  %vm3246 = vweird.f32 %v2338
  %vm3247 = vweird.f32 %v3241
  %vm3248 = vmor %vm3246, %vm3247
  %v3249 = vsel %vm3248, %v3241, %v3245
  %v3250 = vand.u32 2147483647, %v2338
  %vm3251 = vcmp.eq.f32.partialorder %v3250, 8.507059e+37
  %v3252 = vand.u32 %v2338, 2147483648
  %v3253 = vor.u32 1.1754944e-38, %v3252
  %v3254 = vsel %vm3251, %v3253, %v3249
  %v3255 = vmul.f32 1.0, %v3254
  %v3256 = vrcp.pop %v2339
  %v3257 = vmul.f32 %v2339, %v3256
  %v3258 = vsub.f32 1.0, %v3257
  %v3259 = vmul.f32 %v3256, %v3258
  %v3260 = vadd.f32 %v3256, %v3259
  %vm3261 = vweird.f32 %v2339
  %vm3262 = vweird.f32 %v3256
  %vm3263 = vmor %vm3261, %vm3262
  %v3264 = vsel %vm3263, %v3256, %v3260
  %v3265 = vand.u32 2147483647, %v2339
  %vm3266 = vcmp.eq.f32.partialorder %v3265, 8.507059e+37
  %v3267 = vand.u32 %v2339, 2147483648
  %v3268 = vor.u32 1.1754944e-38, %v3267
  %v3269 = vsel %vm3266, %v3268, %v3264
  %v3270 = vmul.f32 1.0, %v3269
  %v3271 = vrcp.pop %v2340
  %v3272 = vmul.f32 %v2340, %v3271
  %v3273 = vsub.f32 1.0, %v3272
  %v3274 = vmul.f32 %v3271, %v3273
  %v3275 = vadd.f32 %v3271, %v3274
  %vm3276 = vweird.f32 %v2340
  %vm3277 = vweird.f32 %v3271
  %vm3278 = vmor %vm3276, %vm3277
  %v3279 = vsel %vm3278, %v3271, %v3275
  %v3280 = vand.u32 2147483647, %v2340
  %vm3281 = vcmp.eq.f32.partialorder %v3280, 8.507059e+37
  %v3282 = vand.u32 %v2340, 2147483648
  %v3283 = vor.u32 1.1754944e-38, %v3282
  %v3284 = vsel %vm3281, %v3283, %v3279
  %v3285 = vmul.f32 1.0, %v3284
  %vm3286 = vcmask 23552
  %3287 = vst.msk [vmem:[%s5] sm:$0xff] %vm3286, %v2355
  %3288 = vst.msk [vmem:[%s5 + $0x8] sm:$0xff] %vm3286, %v2370
  %3289 = vst.msk [vmem:[%s5 + $0x10] sm:$0xff] %vm3286, %v2385
  %3290 = vst.msk [vmem:[%s5 + $0x18] sm:$0xff] %vm3286, %v2400
  %3291 = vst.msk [vmem:[%s5 + $0x20] sm:$0xff] %vm3286, %v2415
  %3292 = vst.msk [vmem:[%s5 + $0x28] sm:$0xff] %vm3286, %v2430
  %3293 = vst.msk [vmem:[%s5 + $0x30] sm:$0xff] %vm3286, %v2445
  %3294 = vst.msk [vmem:[%s5 + $0x38] sm:$0xff] %vm3286, %v2460
  %3295 = vst.msk [vmem:[%s5 + $0x40] sm:$0xff] %vm3286, %v2475
  %3296 = vst.msk [vmem:[%s5 + $0x48] sm:$0xff] %vm3286, %v2490
  %3297 = vst.msk [vmem:[%s5 + $0x50] sm:$0xff] %vm3286, %v2505
  %3298 = vst.msk [vmem:[%s5 + $0x58] sm:$0xff] %vm3286, %v2520
  %3299 = vst.msk [vmem:[%s5 + $0x60] sm:$0xff] %vm3286, %v2535
  %3300 = vst.msk [vmem:[%s5 + $0x68] sm:$0xff] %vm3286, %v2550
  %3301 = vst.msk [vmem:[%s5 + $0x70] sm:$0xff] %vm3286, %v2565
  %3302 = vst.msk [vmem:[%s5 + $0x78] sm:$0xff] %vm3286, %v2580
  %3303 = vst.msk [vmem:[%s5 + $0x80] sm:$0xff] %vm3286, %v2595
  %3304 = vst.msk [vmem:[%s5 + $0x88] sm:$0xff] %vm3286, %v2610
  %3305 = vst.msk [vmem:[%s5 + $0x90] sm:$0xff] %vm3286, %v2625
  %3306 = vst.msk [vmem:[%s5 + $0x98] sm:$0xff] %vm3286, %v2640
  %3307 = vst.msk [vmem:[%s5 + $0xa0] sm:$0xff] %vm3286, %v2655
  %3308 = vst.msk [vmem:[%s5 + $0xa8] sm:$0xff] %vm3286, %v2670
  %3309 = vst.msk [vmem:[%s5 + $0xb0] sm:$0xff] %vm3286, %v2685
  %3310 = vst.msk [vmem:[%s5 + $0xb8] sm:$0xff] %vm3286, %v2700
  %3311 = vst.msk [vmem:[%s5 + $0xc0] sm:$0xff] %vm3286, %v2715
  %3312 = vst.msk [vmem:[%s5 + $0xc8] sm:$0xff] %vm3286, %v2730
  %3313 = vst.msk [vmem:[%s5 + $0xd0] sm:$0xff] %vm3286, %v2745
  %3314 = vst.msk [vmem:[%s5 + $0xd8] sm:$0xff] %vm3286, %v2760
  %3315 = vst.msk [vmem:[%s5 + $0xe0] sm:$0xff] %vm3286, %v2775
  %3316 = vst.msk [vmem:[%s5 + $0xe8] sm:$0xff] %vm3286, %v2790
  %3317 = vst.msk [vmem:[%s5 + $0xf0] sm:$0xff] %vm3286, %v2805
  %3318 = vst.msk [vmem:[%s5 + $0xf8] sm:$0xff] %vm3286, %v2820
  %3319 = vst.msk [vmem:[%s5 + $0x100] sm:$0xff] %vm3286, %v2835
  %3320 = vst.msk [vmem:[%s5 + $0x108] sm:$0xff] %vm3286, %v2850
  %3321 = vst.msk [vmem:[%s5 + $0x110] sm:$0xff] %vm3286, %v2865
  %3322 = vst.msk [vmem:[%s5 + $0x118] sm:$0xff] %vm3286, %v2880
  %3323 = vst.msk [vmem:[%s5 + $0x120] sm:$0xff] %vm3286, %v2895
  %3324 = vst.msk [vmem:[%s5 + $0x128] sm:$0xff] %vm3286, %v2910
  %3325 = vst.msk [vmem:[%s5 + $0x130] sm:$0xff] %vm3286, %v2925
  %3326 = vst.msk [vmem:[%s5 + $0x138] sm:$0xff] %vm3286, %v2940
  %3327 = vst.msk [vmem:[%s5 + $0x140] sm:$0xff] %vm3286, %v2955
  %3328 = vst.msk [vmem:[%s5 + $0x148] sm:$0xff] %vm3286, %v2970
  %3329 = vst.msk [vmem:[%s5 + $0x150] sm:$0xff] %vm3286, %v2985
  %3330 = vst.msk [vmem:[%s5 + $0x158] sm:$0xff] %vm3286, %v3000
  %3331 = vst.msk [vmem:[%s5 + $0x160] sm:$0xff] %vm3286, %v3015
  %3332 = vst.msk [vmem:[%s5 + $0x168] sm:$0xff] %vm3286, %v3030
  %3333 = vst.msk [vmem:[%s5 + $0x170] sm:$0xff] %vm3286, %v3045
  %3334 = vst.msk [vmem:[%s5 + $0x178] sm:$0xff] %vm3286, %v3060
  %3335 = vst.msk [vmem:[%s5 + $0x180] sm:$0xff] %vm3286, %v3075
  %3336 = vst.msk [vmem:[%s5 + $0x188] sm:$0xff] %vm3286, %v3090
  %3337 = vst.msk [vmem:[%s5 + $0x190] sm:$0xff] %vm3286, %v3105
  %3338 = vst.msk [vmem:[%s5 + $0x198] sm:$0xff] %vm3286, %v3120
  %3339 = vst.msk [vmem:[%s5 + $0x1a0] sm:$0xff] %vm3286, %v3135
  %3340 = vst.msk [vmem:[%s5 + $0x1a8] sm:$0xff] %vm3286, %v3150
  %3341 = vst.msk [vmem:[%s5 + $0x1b0] sm:$0xff] %vm3286, %v3165
  %3342 = vst.msk [vmem:[%s5 + $0x1b8] sm:$0xff] %vm3286, %v3180
  %3343 = vst.msk [vmem:[%s5 + $0x1c0] sm:$0xff] %vm3286, %v3195
  %3344 = vst.msk [vmem:[%s5 + $0x1c8] sm:$0xff] %vm3286, %v3210
  %3345 = vst.msk [vmem:[%s5 + $0x1d0] sm:$0xff] %vm3286, %v3225
  %3346 = vst.msk [vmem:[%s5 + $0x1d8] sm:$0xff] %vm3286, %v3240
  %3347 = vst.msk [vmem:[%s5 + $0x1e0] sm:$0xff] %vm3286, %v3255
  %3348 = vst.msk [vmem:[%s5 + $0x1e8] sm:$0xff] %vm3286, %v3270
  %vm3349 = vcmask 19456
  %3350 = vst.msk [vmem:[%s5 + $0x1f0] sm:$0xf] %vm3349, %v3285
  // Predicated region
  $region22: #{tpu_custom_call.1} parent=0 // pred_check
    _
  $region23: #{tpu_custom_call.1} parent=0 // pred_check_branch
    %3352 = sbr.rel (0) target = $region25
  $region24: #{tpu_custom_call.1} parent=0 // pred_region
    _
  $region25: #{tpu_custom_call.1} parent=0 // pred_fallthru
    _
  // Predicated region
  $region26: #{tpu_custom_call.1} parent=0 // pred_check
    _
  $region27: #{tpu_custom_call.1} parent=0 // pred_check_branch
    %3354 = sbr.rel (0) target = $region29
  $region28: #{tpu_custom_call.1} parent=0 // pred_region
    _
  $region29: #{tpu_custom_call.1} parent=0 // pred_fallthru
    _

</llo_original>
